<compile_context>
chip_gen: v7x
topology: tpu7x:2x2x1
jax: 0.10.0
libtpu: 0.0.40
codegen_flags: <defaults>
</compile_context>

<pallas_src>
import functools

import jax
import jax.numpy as jnp
from jax.experimental import pallas as pl
from jax.experimental.pallas import tpu as pltpu


# ------------------------- hardware-aware constants --------------------------

def _vmem_limit_bytes():
    # ~3/4 of physical VMEM, capped at 100 MiB (v5e/v6e 128 MiB -> 96 MiB,
    # v7x 64 MiB -> 48 MiB).
    cap = 64 * 1024 * 1024
    try:
        info = pltpu.get_tpu_info()
        cap = int(getattr(info, "vmem_capacity_bytes", cap) or cap)
    except Exception:
        pass
    return min(cap * 3 // 4, 100 * 1024 * 1024)


_VMEM_LIMIT = _vmem_limit_bytes()


# ------------------------------ small helpers --------------------------------

def _round_up(x, m):
    return (x + m - 1) // m * m


def _pick_row_block(H, W, cap):
    """Largest TB = th*W with th | H, TB <= cap and TB % 8 == 0 (or TB == HW)."""
    fallback = H * W
    for th in range(H, 0, -1):
        if H % th:
            continue
        tb = th * W
        if tb % 8 == 0 or tb == H * W:
            if tb <= cap:
                return tb
            fallback = tb            # smallest admissible block seen so far
    return fallback


def _pick_halo(TB, W):
    """Smallest multiple of 8 that divides TB and is >= W + 1."""
    for h in range(8, TB + 1, 8):
        if TB % h == 0 and h >= W + 1:
            return h
    return TB


def _pick_seq_block(L, cap):
    if L <= cap:
        return L
    for tb in range(cap, 7, -8):
        if L % tb == 0:
            return tb
    return L


# --------------------------- tiled matmul (1x1 conv) --------------------------

def _matmul_kernel(*refs, has_res):
    # Single-K matmul (K = Cin <= 512 in this decoder): no accumulator scratch,
    # fused bias (+residual) epilogue, direct store.
    if has_res:
        x_ref, w_ref, b_ref, r_ref, o_ref = refs
    else:
        x_ref, w_ref, b_ref, o_ref = refs
        r_ref = None
    y = jnp.dot(x_ref[...], w_ref[...], preferred_element_type=jnp.float32)
    y = y + b_ref[...]
    if r_ref is not None:
        y = y + r_ref[...].astype(jnp.float32)
    o_ref[...] = y.astype(o_ref.dtype)


def matmul_bias(x, w, b, residual=None):
    """x: (M, K), w: (K, N) bf16, b: (1, N) fp32; optional residual (M, N)."""
    M, K = x.shape
    N = w.shape[1]
    x = x.astype(jnp.bfloat16)
    w = w.astype(jnp.bfloat16)

    if M >= 1024:
        TM = 1024
    elif M >= 512:
        TM = 512
    else:
        TM = _round_up(M, 16)
    TN = N if N <= 512 else 512
    Mp, Np = _round_up(M, TM), _round_up(N, TN)

    if Mp != M:
        x = jnp.pad(x, ((0, Mp - M), (0, 0)))
    bp = b.astype(jnp.float32)
    if Np != N:
        w = jnp.pad(w, ((0, 0), (0, Np - N)))
        bp = jnp.pad(bp, ((0, 0), (0, Np - N)))

    has_res = residual is not None
    inputs = [x, w, bp]
    in_specs = [
        pl.BlockSpec((TM, K), lambda i, j: (i, 0)),
        pl.BlockSpec((K, TN), lambda i, j: (0, j)),
        pl.BlockSpec((1, TN), lambda i, j: (0, j)),
    ]
    if has_res:
        r = residual.astype(jnp.bfloat16)
        if (Mp, Np) != (M, N):
            r = jnp.pad(r, ((0, Mp - M), (0, Np - N)))
        inputs.append(r)
        in_specs.append(pl.BlockSpec((TM, TN), lambda i, j: (i, j)))

    out = pl.pallas_call(
        functools.partial(_matmul_kernel, has_res=has_res),
        grid=(Mp // TM, Np // TN),
        in_specs=in_specs,
        out_specs=pl.BlockSpec((TM, TN), lambda i, j: (i, j)),
        out_shape=jax.ShapeDtypeStruct((Mp, Np), jnp.bfloat16),
        compiler_params=pltpu.CompilerParams(
            dimension_semantics=("parallel", "parallel"),
            vmem_limit_bytes=_VMEM_LIMIT),
        cost_estimate=pl.CostEstimate(
            flops=2 * Mp * K * Np, transcendentals=0,
            bytes_accessed=2 * (Mp * K + K * Np
                                + (2 if has_res else 1) * Mp * Np) + 4 * Np),
    )(*inputs)
    if (Mp, Np) != (M, N):
        out = out[:M, :N]
    return out


def conv1x1(x, w, b, residual=None):
    """1x1 conv on NHWC bf16 data.  w: (Cin, Cout) bf16, b: (1, Cout) fp32."""
    N, H, W, Cin = x.shape
    Cout = w.shape[-1]
    res = None if residual is None else residual.reshape(N * H * W, Cout)
    y = matmul_bias(x.reshape(N * H * W, Cin), w, b, residual=res)
    return y.reshape(N, H, W, Cout)


# --------------------- fused 3x3 conv (+GroupNorm/SiLU) ----------------------

def _conv3x3_kernel(*refs, TB, W, HW, HALO, has_norm, has_res, tapcat):
    xm_ref, xl_ref, xr_ref, w_ref, b_ref, col_ref = refs[:6]
    pos = 6
    sc_ref = sh_ref = res_ref = None
    if has_norm:
        sc_ref, sh_ref = refs[pos], refs[pos + 1]
        pos += 2
    if has_res:
        res_ref = refs[pos]
        pos += 1
    o_ref, win_ref, acc_ref = refs[pos], refs[pos + 1], refs[pos + 2]

    blk = pl.program_id(1)

    def act(v):
        # Folded GroupNorm scale/shift + SiLU, applied while filling the
        # window scratch (so the GN "apply" pass never round-trips HBM).
        if not has_norm:
            return v
        y = v.astype(jnp.float32) * sc_ref[0] + sh_ref[0]
        y = y * jax.nn.sigmoid(y)
        return y.astype(jnp.bfloat16)

    # Contiguous halo window: [left halo | main block | right halo].
    win_ref[0:HALO, :] = act(xl_ref[0])
    win_ref[HALO:HALO + TB, :] = act(xm_ref[0])
    win_ref[HALO + TB:HALO + TB + HALO, :] = act(xr_ref[0])

    # Zero-padding edge masks (left/right columns, top/bottom rows).
    col = col_ref[...]                                            # (TB, 1) i32
    g = blk * TB + jax.lax.broadcasted_iota(jnp.int32, (TB, 1), 0)
    ml, mr = col != 0, col != (W - 1)
    mt, mb = g >= W, g < (HW - W)

    def tap(dy, dx):
        off = HALO + (dy - 1) * W + (dx - 1)
        a = win_ref[off:off + TB, :]
        m = None
        if dy == 0:
            m = mt
        elif dy == 2:
            m = mb
        if dx == 0:
            m = ml if m is None else jnp.logical_and(m, ml)
        elif dx == 2:
            m = mr if m is None else jnp.logical_and(m, mr)
        if m is not None:
            a = jnp.where(m, a, jnp.zeros_like(a))
        return a

    acc_ref[...] = jnp.broadcast_to(b_ref[...], acc_ref.shape)   # bias init
    if tapcat:
        # 3 matmuls with K = 3*Cin: keeps the 256-deep v6e/v7x MXU filled.
        for dy in range(3):
            lhs = jnp.concatenate([tap(dy, 0), tap(dy, 1), tap(dy, 2)], axis=1)
            acc_ref[...] += jnp.dot(lhs, w_ref[dy],
                                    preferred_element_type=jnp.float32)
    else:
        for dy in range(3):
            for dx in range(3):
                acc_ref[...] += jnp.dot(tap(dy, dx), w_ref[dy * 3 + dx],
                                        preferred_element_type=jnp.float32)

    y = acc_ref[...]
    if has_res:
        y = y + res_ref[0].astype(jnp.float32)
    o_ref[0] = y.astype(o_ref.dtype)


def conv3x3(x, w9, b, *, prenorm=None, residual=None):
    """3x3 conv, stride 1, zero padding 1, on NHWC data.

    w9: (9, Cin, Cout) bf16 (tap index = dy*3 + dx), b: (1, Cout) fp32.
    prenorm: optional (scale, shift), each (N, 1, Cin) fp32 -- per-image,
        per-channel affine (folded GroupNorm) followed by SiLU, applied to the
        input on the fly inside the kernel.
    residual: optional (N, H, W, Cout) added in the store epilogue.
    """
    N, H, W, Cin = x.shape
    Cout = w9.shape[-1]
    HW = H * W
    x3 = x.reshape(N, HW, Cin).astype(jnp.bfloat16)

    has_norm = prenorm is not None
    has_res = residual is not None

    # VMEM-aware row-block: main(2x) + window + acc + out(2x) + residual(2x).
    per_row = 6 * Cin + 8 * Cout + (4 * Cout if has_res else 0)
    wbytes = 2 * 9 * Cin * Cout * 2
    budget = max(4 << 20, min(_VMEM_LIMIT * 2 // 3, 32 << 20) - wbytes)
    TB = _pick_row_block(H, W, cap=max(256, min(8192, budget // per_row)))
    nblk = HW // TB
    HALO = _pick_halo(TB, W)
    r = TB // HALO                       # halo blocks per main block
    nhb = HW // HALO                     # number of halo-sized blocks

    tapcat = (Cin % 128 == 0)
    w_pass = w9.astype(jnp.bfloat16)
    if tapcat:
        w_pass = w_pass.reshape(3, 3 * Cin, Cout)
    col = (jnp.arange(TB, dtype=jnp.int32) % W).reshape(TB, 1)

    inputs = [x3, x3, x3, w_pass, b.astype(jnp.float32), col]
    in_specs = [
        pl.BlockSpec((1, TB, Cin), lambda n, bk: (n, bk, 0)),
        pl.BlockSpec((1, HALO, Cin),
                     lambda n, bk: (n, jnp.clip(bk * r - 1, 0, nhb - 1), 0)),
        pl.BlockSpec((1, HALO, Cin),
                     lambda n, bk: (n, jnp.clip((bk + 1) * r, 0, nhb - 1), 0)),
        pl.BlockSpec(tuple(w_pass.shape), lambda n, bk: (0, 0, 0)),
        pl.BlockSpec((1, Cout), lambda n, bk: (0, 0)),
        pl.BlockSpec((TB, 1), lambda n, bk: (0, 0)),
    ]
    if has_norm:
        scale, shift = prenorm
        inputs += [scale.astype(jnp.float32), shift.astype(jnp.float32)]
        in_specs += [pl.BlockSpec((1, 1, Cin), lambda n, bk: (n, 0, 0)),
                     pl.BlockSpec((1, 1, Cin), lambda n, bk: (n, 0, 0))]
    if has_res:
        inputs.append(residual.astype(jnp.bfloat16).reshape(N, HW, Cout))
        in_specs.append(pl.BlockSpec((1, TB, Cout), lambda n, bk: (n, bk, 0)))

    flops = 2 * N * HW * 9 * Cin * Cout
    bytes_accessed = (2 * N * (HW + 2 * nblk * HALO) * Cin
                      + 2 * 9 * Cin * Cout
                      + 2 * (2 if has_res else 1) * N * HW * Cout + 4 * Cout)
    transc = N * (HW + 2 * nblk * HALO) if has_norm else 0

    out = pl.pallas_call(
        functools.partial(_conv3x3_kernel, TB=TB, W=W, HW=HW, HALO=HALO,
                          has_norm=has_norm, has_res=has_res, tapcat=tapcat),
        grid=(N, nblk),
        in_specs=in_specs,
        out_specs=pl.BlockSpec((1, TB, Cout), lambda n, bk: (n, bk, 0)),
        out_shape=jax.ShapeDtypeStruct((N, HW, Cout), jnp.bfloat16),
        scratch_shapes=[pltpu.VMEM((TB + 2 * HALO, Cin), jnp.bfloat16),
                        pltpu.VMEM((TB, Cout), jnp.float32)],
        compiler_params=pltpu.CompilerParams(
            dimension_semantics=("parallel", "parallel"),
            vmem_limit_bytes=_VMEM_LIMIT),
        cost_estimate=pl.CostEstimate(flops=flops, transcendentals=transc,
                                      bytes_accessed=bytes_accessed),
    )(*inputs)
    return out.reshape(N, H, W, Cout)


# ---------------------------- GroupNorm (stats/apply) -------------------------

def _gn_stats_kernel(x_ref, s1_ref, s2_ref):
    t = pl.program_id(1)

    @pl.when(t == 0)
    def _():
        s1_ref[...] = jnp.zeros_like(s1_ref)
        s2_ref[...] = jnp.zeros_like(s2_ref)

    x = x_ref[...].astype(jnp.float32)                # (1, TB, C)
    s1_ref[...] += jnp.sum(x, axis=1, keepdims=True)
    s2_ref[...] += jnp.sum(x * x, axis=1, keepdims=True)


def gn_scale_shift(x, gamma, beta, *, num_groups=32, eps=1e-6):
    """Per-image, per-channel (scale, shift) of a GroupNorm (fp32 stats)."""
    N, H, W, C = x.shape
    HW = H * W
    x3 = x.reshape(N, HW, C)
    TB = _pick_seq_block(HW, cap=8192)
    grid = (N, HW // TB)

    s1, s2 = pl.pallas_call(
        _gn_stats_kernel,
        grid=grid,
        in_specs=[pl.BlockSpec((1, TB, C), lambda n, t: (n, t, 0))],
        out_specs=(pl.BlockSpec((1, 1, C), lambda n, t: (n, 0, 0)),
                   pl.BlockSpec((1, 1, C), lambda n, t: (n, 0, 0))),
        out_shape=(jax.ShapeDtypeStruct((N, 1, C), jnp.float32),
                   jax.ShapeDtypeStruct((N, 1, C), jnp.float32)),
        compiler_params=pltpu.CompilerParams(
            dimension_semantics=("parallel", "arbitrary"),
            vmem_limit_bytes=_VMEM_LIMIT),
    )(x3)

    # Tiny per-group math on (N, C) statistics stays in plain JAX.
    Cg = C // num_groups
    cnt = float(HW * Cg)
    gs1 = s1.reshape(N, num_groups, Cg).sum(-1)
    gs2 = s2.reshape(N, num_groups, Cg).sum(-1)
    mean = gs1 / cnt
    var = gs2 / cnt - mean * mean                     # biased var (torch)
    rstd = jax.lax.rsqrt(var + eps)
    mean_c = jnp.repeat(mean, Cg, axis=1)
    rstd_c = jnp.repeat(rstd, Cg, axis=1)
    scale = (rstd_c * gamma[None, :]).reshape(N, 1, C).astype(jnp.float32)
    shift = (beta[None, :] - mean_c * rstd_c * gamma[None, :]
             ).reshape(N, 1, C).astype(jnp.float32)
    return scale, shift


def _gn_apply_kernel(x_ref, sc_ref, sh_ref, o_ref, *, silu):
    y = x_ref[...].astype(jnp.float32) * sc_ref[...] + sh_ref[...]
    if silu:
        y = y * jax.nn.sigmoid(y)
    o_ref[...] = y.astype(o_ref.dtype)


def group_norm(x, gamma, beta, *, num_groups=32, eps=1e-6, silu=False):
    """Materialised GroupNorm (only used where several consumers share it)."""
    N, H, W, C = x.shape
    HW = H * W
    scale, shift = gn_scale_shift(x, gamma, beta, num_groups=num_groups, eps=eps)
    x3 = x.reshape(N, HW, C)
    TB = _pick_seq_block(HW, cap=8192)
    grid = (N, HW // TB)
    y = pl.pallas_call(
        functools.partial(_gn_apply_kernel, silu=silu),
        grid=grid,
        in_specs=[pl.BlockSpec((1, TB, C), lambda n, t: (n, t, 0)),
                  pl.BlockSpec((1, 1, C), lambda n, t: (n, 0, 0)),
                  pl.BlockSpec((1, 1, C), lambda n, t: (n, 0, 0))],
        out_specs=pl.BlockSpec((1, TB, C), lambda n, t: (n, t, 0)),
        out_shape=jax.ShapeDtypeStruct((N, HW, C), jnp.bfloat16),
        compiler_params=pltpu.CompilerParams(
            dimension_semantics=("parallel", "parallel"),
            vmem_limit_bytes=_VMEM_LIMIT),
    )(x3, scale, shift)
    return y.reshape(N, H, W, C)


# ----------------------------- 2x NN upsample ---------------------------------

def _upsample2x_kernel(x_ref, o_ref):
    x = x_ref[...]                                     # (1, th, W, C)
    y = jnp.concatenate([x, x], axis=-1)               # column duplication
    o_ref[...] = jnp.broadcast_to(y[:, :, None, :, :], o_ref.shape)  # row dup


def upsample2x(x):
    """Nearest-neighbour 2x upsample in a single lane-dense Pallas pass."""
    N, H, W, C = x.shape
    x = x.astype(jnp.bfloat16)
    row_bytes = 10 * W * C                     # in (2B) + out (8B) per src row
    cap = max(1, (8 << 20) // row_bytes)
    th = 1
    for cand in range(H, 0, -1):
        if H % cand == 0 and cand <= cap:
            th = cand
            break
    out = pl.pallas_call(
        _upsample2x_kernel,
        grid=(N, H // th),
        in_specs=[pl.BlockSpec((1, th, W, C), lambda n, t: (n, t, 0, 0))],
        out_specs=pl.BlockSpec((1, th, 2, W, 2 * C),
                               lambda n, t: (n, t, 0, 0, 0)),
        out_shape=jax.ShapeDtypeStruct((N, H, 2, W, 2 * C), jnp.bfloat16),
        compiler_params=pltpu.CompilerParams(
            dimension_semantics=("parallel", "parallel"),
            vmem_limit_bytes=_VMEM_LIMIT),
    )(x)
    # (N, H, 2, W, 2, C) -> (N, 2H, 2W, C) is a contiguous (free) reshape.
    return out.reshape(N, 2 * H, 2 * W, C)


# ----------------------- flash-style spatial attention ------------------------

def _attn_kernel(q_ref, k_ref, v_ref, o_ref, m_ref, l_ref, acc_ref):
    ki = pl.program_id(2)

    @pl.when(ki == 0)
    def _():
        m_ref[...] = jnp.full_like(m_ref, -jnp.inf)
        l_ref[...] = jnp.zeros_like(l_ref)
        acc_ref[...] = jnp.zeros_like(acc_ref)

    # scale is pre-folded into the q projection weights.
    s = jnp.einsum('bqc,bkc->bqk', q_ref[...], k_ref[...],
                   preferred_element_type=jnp.float32)
    m_prev = m_ref[...]
    m_new = jnp.maximum(m_prev, jnp.max(s, axis=-1, keepdims=True))
    alpha = jnp.exp(m_prev - m_new)
    p = jnp.exp(s - m_new)
    l_ref[...] = alpha * l_ref[...] + jnp.sum(p, axis=-1, keepdims=True)
    acc_ref[...] = alpha * acc_ref[...] + jnp.einsum(
        'bqk,bkc->bqc', p.astype(v_ref.dtype), v_ref[...],
        preferred_element_type=jnp.float32)
    m_ref[...] = m_new

    @pl.when(ki == pl.num_programs(2) - 1)
    def _():
        o_ref[...] = (acc_ref[...] *
                      pl.reciprocal(l_ref[...], approx=True)).astype(o_ref.dtype)


def spatial_attention(q, k, v):
    """q, k, v: (N, HW, C) bf16 -> (N, HW, C) bf16 (softmax over keys)."""
    N, HW, C = q.shape
    TQ = _pick_seq_block(HW, cap=512)
    TK = _pick_seq_block(HW, cap=512)
    grid = (N, HW // TQ, HW // TK)
    return pl.pallas_call(
        _attn_kernel,
        grid=grid,
        in_specs=[pl.BlockSpec((1, TQ, C), lambda n, qi, ki: (n, qi, 0)),
                  pl.BlockSpec((1, TK, C), lambda n, qi, ki: (n, ki, 0)),
                  pl.BlockSpec((1, TK, C), lambda n, qi, ki: (n, ki, 0))],
        out_specs=pl.BlockSpec((1, TQ, C), lambda n, qi, ki: (n, qi, 0)),
        out_shape=jax.ShapeDtypeStruct((N, HW, C), jnp.bfloat16),
        scratch_shapes=[pltpu.VMEM((1, TQ, 1), jnp.float32),
                        pltpu.VMEM((1, TQ, 1), jnp.float32),
                        pltpu.VMEM((1, TQ, C), jnp.float32)],
        compiler_params=pltpu.CompilerParams(
            dimension_semantics=("parallel", "parallel", "arbitrary"),
            vmem_limit_bytes=_VMEM_LIMIT),
        cost_estimate=pl.CostEstimate(
            flops=4 * N * HW * HW * C,
            transcendentals=N * HW * HW,
            bytes_accessed=2 * 4 * N * HW * C),
    )(q.astype(jnp.bfloat16), k.astype(jnp.bfloat16), v.astype(jnp.bfloat16))


# ---------------------------- parameter factory -------------------------------

class ParamFactory:
    def __init__(self, key):
        self.key = key

    def next(self):
        self.key, sub = jax.random.split(self.key)
        return sub

    def conv3x3(self, cin, cout):
        w = 0.05 * jax.random.normal(self.next(), (3, 3, cin, cout), jnp.float32)
        b = 0.01 * jax.random.normal(self.next(), (cout,), jnp.float32)
        return {'w': w.reshape(9, cin, cout).astype(jnp.bfloat16),
                'b': b.reshape(1, cout)}

    def conv1x1(self, cin, cout):
        w = 0.05 * jax.random.normal(self.next(), (cin, cout), jnp.float32)
        b = 0.01 * jax.random.normal(self.next(), (cout,), jnp.float32)
        return {'w': w.astype(jnp.bfloat16), 'b': b.reshape(1, cout)}

    def groupnorm(self, c):
        # torch GroupNorm(affine=True) default init: weight=1, bias=0.
        return {'gamma': jnp.ones((c,), jnp.float32),
                'beta': jnp.zeros((c,), jnp.float32)}


# ----------------------------- block forwards ---------------------------------

def init_resnet_block(pf, cin, cout):
    p = {'norm1': pf.groupnorm(cin),
         'conv1': pf.conv3x3(cin, cout),
         'norm2': pf.groupnorm(cout),
         'conv2': pf.conv3x3(cout, cout)}
    if cin != cout:
        p['nin_shortcut'] = pf.conv1x1(cin, cout)
    return p


def resnet_block(p, x):
    # GroupNorm+SiLU are folded into the following conv3x3 (only the tiny
    # stats pass touches HBM); dropout(p=0.0) is the identity.
    s1, t1 = gn_scale_shift(x, p['norm1']['gamma'], p['norm1']['beta'])
    h = conv3x3(x, p['conv1']['w'], p['conv1']['b'], prenorm=(s1, t1))
    s2, t2 = gn_scale_shift(h, p['norm2']['gamma'], p['norm2']['beta'])
    shortcut = x
    if 'nin_shortcut' in p:
        shortcut = conv1x1(x, p['nin_shortcut']['w'], p['nin_shortcut']['b'])
    # residual add fused into conv2's store epilogue.
    return conv3x3(h, p['conv2']['w'], p['conv2']['b'], prenorm=(s2, t2),
                   residual=shortcut)


def init_attn_block(pf, c):
    p = {'norm': pf.groupnorm(c),
         'q': pf.conv1x1(c, c), 'k': pf.conv1x1(c, c), 'v': pf.conv1x1(c, c),
         'proj_out': pf.conv1x1(c, c)}
    # Fold the attention scale (C^-0.5) into the q projection at init.
    s = float(c) ** (-0.5)
    p['q'] = {'w': (p['q']['w'].astype(jnp.float32) * s).astype(jnp.bfloat16),
              'b': p['q']['b'] * s}
    return p


def attn_block(p, x):
    N, H, W, C = x.shape
    # The normalised activation is shared by q/k/v, so it is materialised once.
    h = group_norm(x, p['norm']['gamma'], p['norm']['beta'], silu=False)
    q = conv1x1(h, p['q']['w'], p['q']['b']).reshape(N, H * W, C)
    k = conv1x1(h, p['k']['w'], p['k']['b']).reshape(N, H * W, C)
    v = conv1x1(h, p['v']['w'], p['v']['b']).reshape(N, H * W, C)
    a = spatial_attention(q, k, v).reshape(N, H, W, C)
    # x + proj_out(a) fused into the projection matmul epilogue.
    return conv1x1(a, p['proj_out']['w'], p['proj_out']['b'], residual=x)


def init_upsample(pf, c):
    return {'conv': pf.conv3x3(c, c)}


def upsample(p, x):
    # TODO(synk): fully fuse the NN 2x upsample into the following conv3x3
    # window build (4-phase 2x2 decomposition) to avoid writing/reading the
    # 4x-sized intermediate at all.
    x = upsample2x(x)
    return conv3x3(x, p['conv']['w'], p['conv']['b'])


# -------------------------------- Decoder -------------------------------------

def init_decoder(pf, *, ch, out_ch, ch_mult, num_res_blocks, attn_resolutions,
                 resolution, z_channels):
    num_resolutions = len(ch_mult)
    block_in = ch * ch_mult[-1]
    curr_res = resolution // 2 ** (num_resolutions - 1)
    params = {'num_resolutions': num_resolutions,
              'num_res_blocks': num_res_blocks}
    params['conv_in'] = pf.conv3x3(z_channels, block_in)
    params['mid'] = {'block_1': init_resnet_block(pf, block_in, block_in),
                     'attn_1': init_attn_block(pf, block_in),
                     'block_2': init_resnet_block(pf, block_in, block_in)}
    up = [None] * num_resolutions
    for i_level in reversed(range(num_resolutions)):
        blocks, attns = [], []
        block_out = ch * ch_mult[i_level]
        for _ in range(num_res_blocks + 1):
            blocks.append(init_resnet_block(pf, block_in, block_out))
            block_in = block_out
            if curr_res in attn_resolutions:
                attns.append(init_attn_block(pf, block_in))
        level = {'block': blocks, 'attn': attns}
        if i_level != 0:
            level['upsample'] = init_upsample(pf, block_in)
            curr_res *= 2
        up[i_level] = level
    params['up'] = up
    params['norm_out'] = pf.groupnorm(block_in)
    params['conv_out'] = pf.conv3x3(block_in, out_ch)
    return params


def decoder_forward(params, z_nchw, *, give_pre_end=False):
    # NCHW (PyTorch convention) -> NHWC bf16 for the kernels.
    z = jnp.transpose(z_nchw, (0, 2, 3, 1)).astype(jnp.bfloat16)
    h = conv3x3(z, params['conv_in']['w'], params['conv_in']['b'])
    h = resnet_block(params['mid']['block_1'], h)
    h = attn_block(params['mid']['attn_1'], h)
    h = resnet_block(params['mid']['block_2'], h)
    for i_level in reversed(range(params['num_resolutions'])):
        level = params['up'][i_level]
        for i_block in range(params['num_res_blocks'] + 1):
            h = resnet_block(level['block'][i_block], h)
            if level['attn']:
                h = attn_block(level['attn'][i_block], h)
        if i_level != 0:
            h = upsample(level['upsample'], h)
    if give_pre_end:
        return jnp.transpose(h, (0, 3, 1, 2)).astype(jnp.float32)
    # norm_out + SiLU folded into conv_out.
    s, t = gn_scale_shift(h, params['norm_out']['gamma'],
                          params['norm_out']['beta'])
    h = conv3x3(h, params['conv_out']['w'], params['conv_out']['b'],
                prenorm=(s, t))
    return jnp.transpose(h, (0, 3, 1, 2)).astype(jnp.float32)   # back to NCHW


# ---------------------------------- main ---------------------------------------

def _selftest_conv(key, n, h, w, cin, cout):
    """Fused conv3x3 (prenorm+SiLU, residual) vs XLA reference."""
    k1, k2, k3, k4, k5, k6 = jax.random.split(key, 6)
    x = jax.random.normal(k1, (n, h, w, cin), jnp.float32).astype(jnp.bfloat16)
    w9 = (0.05 * jax.random.normal(k2, (9, cin, cout), jnp.float32)
          ).astype(jnp.bfloat16)
    b = 0.1 * jax.random.normal(k3, (1, cout), jnp.float32)
    scale = 1.0 + 0.1 * jax.random.normal(k4, (n, 1, cin), jnp.float32)
    shift = 0.1 * jax.random.normal(k5, (n, 1, cin), jnp.float32)
    res = jax.random.normal(k6, (n, h, w, cout), jnp.float32).astype(jnp.bfloat16)

    out = conv3x3(x, w9, b, prenorm=(scale, shift), residual=res)

    a = x.astype(jnp.float32).reshape(n, h * w, cin) * scale + shift
    a = a * jax.nn.sigmoid(a)
    a = a.astype(jnp.bfloat16).astype(jnp.float32).reshape(n, h, w, cin)
    ref = jax.lax.conv_general_dilated(
        a, w9.astype(jnp.float32).reshape(3, 3, cin, cout),
        window_strides=(1, 1), padding='SAME',
        dimension_numbers=('NHWC', 'HWIO', 'NHWC'))
    ref = ref + b.reshape(1, 1, 1, cout) + res.astype(jnp.float32)
    err = float(jnp.max(jnp.abs(out.astype(jnp.float32) - ref)))
    assert err < 0.1, f"conv3x3 mismatch (cin={cin}): max abs err {err}"


if __name__ == "__main__":
    root = jax.random.PRNGKey(0)
    k_t1, k_t2, k_t3, k_model = jax.random.split(root, 4)

    # Correctness self-tests for the restructured conv3x3 (both MXU paths,
    # edge masks, multi-block halos) and the new single-pass upsample.
    _selftest_conv(k_t1, n=2, h=8, w=4, cin=64, cout=128)     # 9-tap path
    _selftest_conv(k_t2, n=1, h=128, w=128, cin=128, cout=128)  # tap-concat, nblk>1
    xu = jax.random.normal(k_t3, (2, 4, 4, 96), jnp.float32).astype(jnp.bfloat16)
    up_ref = jnp.repeat(jnp.repeat(xu, 2, axis=1), 2, axis=2)
    assert bool(jnp.array_equal(upsample2x(xu), up_ref)), "upsample2x mismatch"

    # Small decoder config (GroupNorm needs channels % 32 == 0); ch=64 so the
    # 128-channel layers exercise the K=3*Cin tap-concatenation path.
    pf = ParamFactory(k_model)
    cfg = dict(ch=64, out_ch=3, ch_mult=(1, 2), num_res_blocks=1,
               attn_resolutions=(4,), resolution=8, z_channels=4)
    params = init_decoder(pf, **cfg)

    # z shape (B, z_channels, curr_res, curr_res) with curr_res = 8 // 2 = 4.
    z = jax.random.normal(pf.next(), (2, 4, 4, 4), jnp.float32)

    out = decoder_forward(params, z)
    out = jax.block_until_ready(out)

    assert out.shape == (2, 3, 8, 8), out.shape
    assert bool(jnp.all(jnp.isfinite(out)))
    print("KERNEL_OK")
</pallas_src>

<mosaic_0001>
module attributes {stable_mosaic.version = 11 : i64} {
  func.func @_conv3x3_kernel(%arg0: i32, %arg1: i32, %arg2: memref<1x32x64xbf16, #tpu.memory_space<vmem>>, %arg3: memref<1x8x64xbf16, #tpu.memory_space<vmem>>, %arg4: memref<1x8x64xbf16, #tpu.memory_space<vmem>>, %arg5: memref<9x64x128xbf16, #tpu.memory_space<vmem>>, %arg6: memref<1x128xf32, #tpu.memory_space<vmem>>, %arg7: memref<32x1xi32, #tpu.memory_space<vmem>>, %arg8: memref<1x1x64xf32, #tpu.memory_space<vmem>>, %arg9: memref<1x1x64xf32, #tpu.memory_space<vmem>>, %arg10: memref<1x32x128xbf16, #tpu.memory_space<vmem>>, %arg11: memref<1x32x128xbf16, #tpu.memory_space<vmem>>, %arg12: memref<48x64xbf16, #tpu.memory_space<vmem>>, %arg13: memref<32x128xf32, #tpu.memory_space<vmem>>) attributes {dimension_semantics = [#tpu.dimension_semantics<parallel>, #tpu.dimension_semantics<parallel>], iteration_bounds = array<i64: 2, 1>, scalar_prefetch = 0 : i64, scratch_operands = 2 : i64, tpu.core_type = #tpu.core_type<tc>, window_params = [{transform_indices = @transform_0, window_bounds = array<i64: 1, 32, 64>}, {transform_indices = @transform_1, window_bounds = array<i64: 1, 8, 64>}, {transform_indices = @transform_2, window_bounds = array<i64: 1, 8, 64>}, {pipeline_mode = #tpu.pipeline_mode<synchronous>, transform_indices = @transform_3, window_bounds = array<i64: 9, 64, 128>}, {pipeline_mode = #tpu.pipeline_mode<synchronous>, transform_indices = @transform_4, window_bounds = array<i64: 1, 128>}, {pipeline_mode = #tpu.pipeline_mode<synchronous>, transform_indices = @transform_5, window_bounds = array<i64: 32, 1>}, {transform_indices = @transform_6, window_bounds = array<i64: 1, 1, 64>}, {transform_indices = @transform_7, window_bounds = array<i64: 1, 1, 64>}, {transform_indices = @transform_8, window_bounds = array<i64: 1, 32, 128>}, {transform_indices = @transform_9, window_bounds = array<i64: 1, 32, 128>}]} {
    %c0 = arith.constant 0 : index
    %c0_0 = arith.constant 0 : index
    %c0_1 = arith.constant 0 : index
    %0 = vector.load %arg3[%c0, %c0_0, %c0_1] : memref<1x8x64xbf16, #tpu.memory_space<vmem>>, vector<1x8x64xbf16>
    %1 = vector.shape_cast %0 : vector<1x8x64xbf16> to vector<8x64xbf16>
    %2 = arith.extf %1 : vector<8x64xbf16> to vector<8x64xf32>
    %c0_2 = arith.constant 0 : index
    %c0_3 = arith.constant 0 : index
    %c0_4 = arith.constant 0 : index
    %3 = vector.load %arg8[%c0_2, %c0_3, %c0_4] : memref<1x1x64xf32, #tpu.memory_space<vmem>>, vector<1x1x64xf32>
    %4 = vector.shape_cast %3 : vector<1x1x64xf32> to vector<1x64xf32>
    %5 = vector.broadcast %4 : vector<1x64xf32> to vector<8x64xf32>
    %6 = arith.mulf %2, %5 : vector<8x64xf32>
    %c0_5 = arith.constant 0 : index
    %c0_6 = arith.constant 0 : index
    %c0_7 = arith.constant 0 : index
    %7 = vector.load %arg9[%c0_5, %c0_6, %c0_7] : memref<1x1x64xf32, #tpu.memory_space<vmem>>, vector<1x1x64xf32>
    %8 = vector.shape_cast %7 : vector<1x1x64xf32> to vector<1x64xf32>
    %9 = vector.broadcast %8 : vector<1x64xf32> to vector<8x64xf32>
    %10 = arith.addf %6, %9 : vector<8x64xf32>
    %11 = arith.negf %10 : vector<8x64xf32>
    %12 = math.exp %11 : vector<8x64xf32>
    %cst = arith.constant 1.000000e+00 : f32
    %13 = vector.broadcast %cst : f32 to vector<8x64xf32>
    %14 = arith.addf %13, %12 : vector<8x64xf32>
    %15 = arith.divf %13, %14 : vector<8x64xf32>
    %16 = arith.mulf %10, %15 : vector<8x64xf32>
    %17 = arith.truncf %16 : vector<8x64xf32> to vector<8x64xbf16>
    %c0_8 = arith.constant 0 : index
    %c0_9 = arith.constant 0 : index
    %18 = vector.load %arg12[%c0_8, %c0_9] : memref<48x64xbf16, #tpu.memory_space<vmem>>, vector<8x64xbf16>
    tpu.vector_store %arg12[%c0_8, %c0_9], %17 {strides = array<i32>} : memref<48x64xbf16, #tpu.memory_space<vmem>>, vector<8x64xbf16>,
    %c0_10 = arith.constant 0 : index
    %c0_11 = arith.constant 0 : index
    %c0_12 = arith.constant 0 : index
    %19 = vector.load %arg2[%c0_10, %c0_11, %c0_12] : memref<1x32x64xbf16, #tpu.memory_space<vmem>>, vector<1x32x64xbf16>
    %20 = vector.shape_cast %19 : vector<1x32x64xbf16> to vector<32x64xbf16>
    %21 = arith.extf %20 : vector<32x64xbf16> to vector<32x64xf32>
    %c0_13 = arith.constant 0 : index
    %c0_14 = arith.constant 0 : index
    %c0_15 = arith.constant 0 : index
    %22 = vector.load %arg8[%c0_13, %c0_14, %c0_15] : memref<1x1x64xf32, #tpu.memory_space<vmem>>, vector<1x1x64xf32>
    %23 = vector.shape_cast %22 : vector<1x1x64xf32> to vector<1x64xf32>
    %24 = vector.broadcast %23 : vector<1x64xf32> to vector<32x64xf32>
    %25 = arith.mulf %21, %24 : vector<32x64xf32>
    %c0_16 = arith.constant 0 : index
    %c0_17 = arith.constant 0 : index
    %c0_18 = arith.constant 0 : index
    %26 = vector.load %arg9[%c0_16, %c0_17, %c0_18] : memref<1x1x64xf32, #tpu.memory_space<vmem>>, vector<1x1x64xf32>
    %27 = vector.shape_cast %26 : vector<1x1x64xf32> to vector<1x64xf32>
    %28 = vector.broadcast %27 : vector<1x64xf32> to vector<32x64xf32>
    %29 = arith.addf %25, %28 : vector<32x64xf32>
    %30 = arith.negf %29 : vector<32x64xf32>
    %31 = math.exp %30 : vector<32x64xf32>
    %cst_19 = arith.constant 1.000000e+00 : f32
    %32 = vector.broadcast %cst_19 : f32 to vector<32x64xf32>
    %33 = arith.addf %32, %31 : vector<32x64xf32>
    %34 = arith.divf %32, %33 : vector<32x64xf32>
    %35 = arith.mulf %29, %34 : vector<32x64xf32>
    %36 = arith.truncf %35 : vector<32x64xf32> to vector<32x64xbf16>
    %c8 = arith.constant 8 : index
    %c0_20 = arith.constant 0 : index
    %37 = vector.load %arg12[%c8, %c0_20] : memref<48x64xbf16, #tpu.memory_space<vmem>>, vector<32x64xbf16>
    tpu.vector_store %arg12[%c8, %c0_20], %36 {strides = array<i32>} : memref<48x64xbf16, #tpu.memory_space<vmem>>, vector<32x64xbf16>,
    %c0_21 = arith.constant 0 : index
    %c0_22 = arith.constant 0 : index
    %c0_23 = arith.constant 0 : index
    %38 = vector.load %arg4[%c0_21, %c0_22, %c0_23] : memref<1x8x64xbf16, #tpu.memory_space<vmem>>, vector<1x8x64xbf16>
    %39 = vector.shape_cast %38 : vector<1x8x64xbf16> to vector<8x64xbf16>
    %40 = arith.extf %39 : vector<8x64xbf16> to vector<8x64xf32>
    %c0_24 = arith.constant 0 : index
    %c0_25 = arith.constant 0 : index
    %c0_26 = arith.constant 0 : index
    %41 = vector.load %arg8[%c0_24, %c0_25, %c0_26] : memref<1x1x64xf32, #tpu.memory_space<vmem>>, vector<1x1x64xf32>
    %42 = vector.shape_cast %41 : vector<1x1x64xf32> to vector<1x64xf32>
    %43 = vector.broadcast %42 : vector<1x64xf32> to vector<8x64xf32>
    %44 = arith.mulf %40, %43 : vector<8x64xf32>
    %c0_27 = arith.constant 0 : index
    %c0_28 = arith.constant 0 : index
    %c0_29 = arith.constant 0 : index
    %45 = vector.load %arg9[%c0_27, %c0_28, %c0_29] : memref<1x1x64xf32, #tpu.memory_space<vmem>>, vector<1x1x64xf32>
    %46 = vector.shape_cast %45 : vector<1x1x64xf32> to vector<1x64xf32>
    %47 = vector.broadcast %46 : vector<1x64xf32> to vector<8x64xf32>
    %48 = arith.addf %44, %47 : vector<8x64xf32>
    %49 = arith.negf %48 : vector<8x64xf32>
    %50 = math.exp %49 : vector<8x64xf32>
    %cst_30 = arith.constant 1.000000e+00 : f32
    %51 = vector.broadcast %cst_30 : f32 to vector<8x64xf32>
    %52 = arith.addf %51, %50 : vector<8x64xf32>
    %53 = arith.divf %51, %52 : vector<8x64xf32>
    %54 = arith.mulf %48, %53 : vector<8x64xf32>
    %55 = arith.truncf %54 : vector<8x64xf32> to vector<8x64xbf16>
    %c40 = arith.constant 40 : index
    %c0_31 = arith.constant 0 : index
    %56 = vector.load %arg12[%c40, %c0_31] : memref<48x64xbf16, #tpu.memory_space<vmem>>, vector<8x64xbf16>
    tpu.vector_store %arg12[%c40, %c0_31], %55 {strides = array<i32>} : memref<48x64xbf16, #tpu.memory_space<vmem>>, vector<8x64xbf16>,
    %c0_32 = arith.constant 0 : index
    %c0_33 = arith.constant 0 : index
    %57 = vector.load %arg7[%c0_32, %c0_33] : memref<32x1xi32, #tpu.memory_space<vmem>>, vector<32x1xi32>
    %c32_i32 = arith.constant 32 : i32
    %58 = arith.muli %arg1, %c32_i32 : i32
    %59 = tpu.iota {dimensions = array<i32: 0>} : vector<32x1xi32>
    %60 = vector.broadcast %58 : i32 to vector<32x1xi32>
    %61 = arith.addi %60, %59 : vector<32x1xi32>
    %c0_i32 = arith.constant 0 : i32
    %62 = vector.broadcast %c0_i32 : i32 to vector<32x1xi32>
    %63 = arith.cmpi ne, %57, %62 : vector<32x1xi32>
    %c3_i32 = arith.constant 3 : i32
    %64 = vector.broadcast %c3_i32 : i32 to vector<32x1xi32>
    %65 = arith.cmpi ne, %57, %64 : vector<32x1xi32>
    %c4_i32 = arith.constant 4 : i32
    %66 = vector.broadcast %c4_i32 : i32 to vector<32x1xi32>
    %67 = arith.cmpi sge, %61, %66 : vector<32x1xi32>
    %c28_i32 = arith.constant 28 : i32
    %68 = vector.broadcast %c28_i32 : i32 to vector<32x1xi32>
    %69 = arith.cmpi slt, %61, %68 : vector<32x1xi32>
    %c0_34 = arith.constant 0 : index
    %c0_35 = arith.constant 0 : index
    %70 = vector.load %arg6[%c0_34, %c0_35] : memref<1x128xf32, #tpu.memory_space<vmem>>, vector<1x128xf32>
    %71 = vector.shape_cast %70 : vector<1x128xf32> to vector<1x128xf32>
    %72 = vector.broadcast %71 : vector<1x128xf32> to vector<32x128xf32>
    %c0_36 = arith.constant 0 : index
    %c0_37 = arith.constant 0 : index
    %73 = vector.load %arg13[%c0_36, %c0_37] : memref<32x128xf32, #tpu.memory_space<vmem>>, vector<32x128xf32>
    tpu.vector_store %arg13[%c0_36, %c0_37], %72 {strides = array<i32>} : memref<32x128xf32, #tpu.memory_space<vmem>>, vector<32x128xf32>,
    %c0_38 = arith.constant 0 : index
    %c0_39 = arith.constant 0 : index
    %74 = vector.load %arg13[%c0_38, %c0_39] : memref<32x128xf32, #tpu.memory_space<vmem>>, vector<32x128xf32>
    %c3 = arith.constant 3 : index
    %c0_40 = arith.constant 0 : index
    %75 = vector.load %arg12[%c3, %c0_40] : memref<48x64xbf16, #tpu.memory_space<vmem>>, vector<32x64xbf16>
    %76 = arith.andi %67, %63 : vector<32x1xi1>
    %cst_41 = arith.constant 0.000000e+00 : bf16
    %77 = vector.broadcast %cst_41 : bf16 to vector<32x64xbf16>
    %78 = vector.shape_cast %76 : vector<32x1xi1> to vector<32x1xi1>
    %79 = vector.broadcast %78 : vector<32x1xi1> to vector<32x64xi1>
    %80 = arith.select %79, %75, %77 : vector<32x64xi1>, vector<32x64xbf16>
    %c0_42 = arith.constant 0 : index
    %c0_43 = arith.constant 0 : index
    %c0_44 = arith.constant 0 : index
    %81 = vector.load %arg5[%c0_42, %c0_43, %c0_44] : memref<9x64x128xbf16, #tpu.memory_space<vmem>>, vector<1x64x128xbf16>
    %82 = vector.shape_cast %81 : vector<1x64x128xbf16> to vector<64x128xbf16>
    %cst_45 = arith.constant dense<0.000000e+00> : vector<32x128xf32>
    %83 = tpu.matmul %80, %82, %cst_45 {dimension_numbers = #tpu.dot_dimension_numbers<[1], [0], [0], [1], [0, 0, 1, 1], [], []>} : vector<32x64xbf16>, vector<64x128xbf16>, vector<32x128xf32> -> vector<32x128xf32>
    %84 = arith.addf %74, %83 : vector<32x128xf32>
    %c0_46 = arith.constant 0 : index
    %c0_47 = arith.constant 0 : index
    %85 = vector.load %arg13[%c0_46, %c0_47] : memref<32x128xf32, #tpu.memory_space<vmem>>, vector<32x128xf32>
    tpu.vector_store %arg13[%c0_46, %c0_47], %84 {strides = array<i32>} : memref<32x128xf32, #tpu.memory_space<vmem>>, vector<32x128xf32>,
    %c0_48 = arith.constant 0 : index
    %c0_49 = arith.constant 0 : index
    %86 = vector.load %arg13[%c0_48, %c0_49] : memref<32x128xf32, #tpu.memory_space<vmem>>, vector<32x128xf32>
    %c4 = arith.constant 4 : index
    %c0_50 = arith.constant 0 : index
    %87 = vector.load %arg12[%c4, %c0_50] : memref<48x64xbf16, #tpu.memory_space<vmem>>, vector<32x64xbf16>
    %cst_51 = arith.constant 0.000000e+00 : bf16
    %88 = vector.broadcast %cst_51 : bf16 to vector<32x64xbf16>
    %89 = vector.shape_cast %67 : vector<32x1xi1> to vector<32x1xi1>
    %90 = vector.broadcast %89 : vector<32x1xi1> to vector<32x64xi1>
    %91 = arith.select %90, %87, %88 : vector<32x64xi1>, vector<32x64xbf16>
    %c1 = arith.constant 1 : index
    %c0_52 = arith.constant 0 : index
    %c0_53 = arith.constant 0 : index
    %92 = vector.load %arg5[%c1, %c0_52, %c0_53] : memref<9x64x128xbf16, #tpu.memory_space<vmem>>, vector<1x64x128xbf16>
    %93 = vector.shape_cast %92 : vector<1x64x128xbf16> to vector<64x128xbf16>
    %cst_54 = arith.constant dense<0.000000e+00> : vector<32x128xf32>
    %94 = tpu.matmul %91, %93, %cst_54 {dimension_numbers = #tpu.dot_dimension_numbers<[1], [0], [0], [1], [0, 0, 1, 1], [], []>} : vector<32x64xbf16>, vector<64x128xbf16>, vector<32x128xf32> -> vector<32x128xf32>
    %95 = arith.addf %86, %94 : vector<32x128xf32>
    %c0_55 = arith.constant 0 : index
    %c0_56 = arith.constant 0 : index
    %96 = vector.load %arg13[%c0_55, %c0_56] : memref<32x128xf32, #tpu.memory_space<vmem>>, vector<32x128xf32>
    tpu.vector_store %arg13[%c0_55, %c0_56], %95 {strides = array<i32>} : memref<32x128xf32, #tpu.memory_space<vmem>>, vector<32x128xf32>,
    %c0_57 = arith.constant 0 : index
    %c0_58 = arith.constant 0 : index
    %97 = vector.load %arg13[%c0_57, %c0_58] : memref<32x128xf32, #tpu.memory_space<vmem>>, vector<32x128xf32>
    %c5 = arith.constant 5 : index
    %c0_59 = arith.constant 0 : index
    %98 = vector.load %arg12[%c5, %c0_59] : memref<48x64xbf16, #tpu.memory_space<vmem>>, vector<32x64xbf16>
    %99 = arith.andi %67, %65 : vector<32x1xi1>
    %cst_60 = arith.constant 0.000000e+00 : bf16
    %100 = vector.broadcast %cst_60 : bf16 to vector<32x64xbf16>
    %101 = vector.shape_cast %99 : vector<32x1xi1> to vector<32x1xi1>
    %102 = vector.broadcast %101 : vector<32x1xi1> to vector<32x64xi1>
    %103 = arith.select %102, %98, %100 : vector<32x64xi1>, vector<32x64xbf16>
    %c2 = arith.constant 2 : index
    %c0_61 = arith.constant 0 : index
    %c0_62 = arith.constant 0 : index
    %104 = vector.load %arg5[%c2, %c0_61, %c0_62] : memref<9x64x128xbf16, #tpu.memory_space<vmem>>, vector<1x64x128xbf16>
    %105 = vector.shape_cast %104 : vector<1x64x128xbf16> to vector<64x128xbf16>
    %cst_63 = arith.constant dense<0.000000e+00> : vector<32x128xf32>
    %106 = tpu.matmul %103, %105, %cst_63 {dimension_numbers = #tpu.dot_dimension_numbers<[1], [0], [0], [1], [0, 0, 1, 1], [], []>} : vector<32x64xbf16>, vector<64x128xbf16>, vector<32x128xf32> -> vector<32x128xf32>
    %107 = arith.addf %97, %106 : vector<32x128xf32>
    %c0_64 = arith.constant 0 : index
    %c0_65 = arith.constant 0 : index
    %108 = vector.load %arg13[%c0_64, %c0_65] : memref<32x128xf32, #tpu.memory_space<vmem>>, vector<32x128xf32>
    tpu.vector_store %arg13[%c0_64, %c0_65], %107 {strides = array<i32>} : memref<32x128xf32, #tpu.memory_space<vmem>>, vector<32x128xf32>,
    %c0_66 = arith.constant 0 : index
    %c0_67 = arith.constant 0 : index
    %109 = vector.load %arg13[%c0_66, %c0_67] : memref<32x128xf32, #tpu.memory_space<vmem>>, vector<32x128xf32>
    %c7 = arith.constant 7 : index
    %c0_68 = arith.constant 0 : index
    %110 = vector.load %arg12[%c7, %c0_68] : memref<48x64xbf16, #tpu.memory_space<vmem>>, vector<32x64xbf16>
    %cst_69 = arith.constant 0.000000e+00 : bf16
    %111 = vector.broadcast %cst_69 : bf16 to vector<32x64xbf16>
    %112 = vector.shape_cast %63 : vector<32x1xi1> to vector<32x1xi1>
    %113 = vector.broadcast %112 : vector<32x1xi1> to vector<32x64xi1>
    %114 = arith.select %113, %110, %111 : vector<32x64xi1>, vector<32x64xbf16>
    %c3_70 = arith.constant 3 : index
    %c0_71 = arith.constant 0 : index
    %c0_72 = arith.constant 0 : index
    %115 = vector.load %arg5[%c3_70, %c0_71, %c0_72] : memref<9x64x128xbf16, #tpu.memory_space<vmem>>, vector<1x64x128xbf16>
    %116 = vector.shape_cast %115 : vector<1x64x128xbf16> to vector<64x128xbf16>
    %cst_73 = arith.constant dense<0.000000e+00> : vector<32x128xf32>
    %117 = tpu.matmul %114, %116, %cst_73 {dimension_numbers = #tpu.dot_dimension_numbers<[1], [0], [0], [1], [0, 0, 1, 1], [], []>} : vector<32x64xbf16>, vector<64x128xbf16>, vector<32x128xf32> -> vector<32x128xf32>
    %118 = arith.addf %109, %117 : vector<32x128xf32>
    %c0_74 = arith.constant 0 : index
    %c0_75 = arith.constant 0 : index
    %119 = vector.load %arg13[%c0_74, %c0_75] : memref<32x128xf32, #tpu.memory_space<vmem>>, vector<32x128xf32>
    tpu.vector_store %arg13[%c0_74, %c0_75], %118 {strides = array<i32>} : memref<32x128xf32, #tpu.memory_space<vmem>>, vector<32x128xf32>,
    %c0_76 = arith.constant 0 : index
    %c0_77 = arith.constant 0 : index
    %120 = vector.load %arg13[%c0_76, %c0_77] : memref<32x128xf32, #tpu.memory_space<vmem>>, vector<32x128xf32>
    %c8_78 = arith.constant 8 : index
    %c0_79 = arith.constant 0 : index
    %121 = vector.load %arg12[%c8_78, %c0_79] : memref<48x64xbf16, #tpu.memory_space<vmem>>, vector<32x64xbf16>
    %c4_80 = arith.constant 4 : index
    %c0_81 = arith.constant 0 : index
    %c0_82 = arith.constant 0 : index
    %122 = vector.load %arg5[%c4_80, %c0_81, %c0_82] : memref<9x64x128xbf16, #tpu.memory_space<vmem>>, vector<1x64x128xbf16>
    %123 = vector.shape_cast %122 : vector<1x64x128xbf16> to vector<64x128xbf16>
    %cst_83 = arith.constant dense<0.000000e+00> : vector<32x128xf32>
    %124 = tpu.matmul %121, %123, %cst_83 {dimension_numbers = #tpu.dot_dimension_numbers<[1], [0], [0], [1], [0, 0, 1, 1], [], []>} : vector<32x64xbf16>, vector<64x128xbf16>, vector<32x128xf32> -> vector<32x128xf32>
    %125 = arith.addf %120, %124 : vector<32x128xf32>
    %c0_84 = arith.constant 0 : index
    %c0_85 = arith.constant 0 : index
    %126 = vector.load %arg13[%c0_84, %c0_85] : memref<32x128xf32, #tpu.memory_space<vmem>>, vector<32x128xf32>
    tpu.vector_store %arg13[%c0_84, %c0_85], %125 {strides = array<i32>} : memref<32x128xf32, #tpu.memory_space<vmem>>, vector<32x128xf32>,
    %c0_86 = arith.constant 0 : index
    %c0_87 = arith.constant 0 : index
    %127 = vector.load %arg13[%c0_86, %c0_87] : memref<32x128xf32, #tpu.memory_space<vmem>>, vector<32x128xf32>
    %c9 = arith.constant 9 : index
    %c0_88 = arith.constant 0 : index
    %128 = vector.load %arg12[%c9, %c0_88] : memref<48x64xbf16, #tpu.memory_space<vmem>>, vector<32x64xbf16>
    %cst_89 = arith.constant 0.000000e+00 : bf16
    %129 = vector.broadcast %cst_89 : bf16 to vector<32x64xbf16>
    %130 = vector.shape_cast %65 : vector<32x1xi1> to vector<32x1xi1>
    %131 = vector.broadcast %130 : vector<32x1xi1> to vector<32x64xi1>
    %132 = arith.select %131, %128, %129 : vector<32x64xi1>, vector<32x64xbf16>
    %c5_90 = arith.constant 5 : index
    %c0_91 = arith.constant 0 : index
    %c0_92 = arith.constant 0 : index
    %133 = vector.load %arg5[%c5_90, %c0_91, %c0_92] : memref<9x64x128xbf16, #tpu.memory_space<vmem>>, vector<1x64x128xbf16>
    %134 = vector.shape_cast %133 : vector<1x64x128xbf16> to vector<64x128xbf16>
    %cst_93 = arith.constant dense<0.000000e+00> : vector<32x128xf32>
    %135 = tpu.matmul %132, %134, %cst_93 {dimension_numbers = #tpu.dot_dimension_numbers<[1], [0], [0], [1], [0, 0, 1, 1], [], []>} : vector<32x64xbf16>, vector<64x128xbf16>, vector<32x128xf32> -> vector<32x128xf32>
    %136 = arith.addf %127, %135 : vector<32x128xf32>
    %c0_94 = arith.constant 0 : index
    %c0_95 = arith.constant 0 : index
    %137 = vector.load %arg13[%c0_94, %c0_95] : memref<32x128xf32, #tpu.memory_space<vmem>>, vector<32x128xf32>
    tpu.vector_store %arg13[%c0_94, %c0_95], %136 {strides = array<i32>} : memref<32x128xf32, #tpu.memory_space<vmem>>, vector<32x128xf32>,
    %c0_96 = arith.constant 0 : index
    %c0_97 = arith.constant 0 : index
    %138 = vector.load %arg13[%c0_96, %c0_97] : memref<32x128xf32, #tpu.memory_space<vmem>>, vector<32x128xf32>
    %c11 = arith.constant 11 : index
    %c0_98 = arith.constant 0 : index
    %139 = vector.load %arg12[%c11, %c0_98] : memref<48x64xbf16, #tpu.memory_space<vmem>>, vector<32x64xbf16>
    %140 = arith.andi %69, %63 : vector<32x1xi1>
    %cst_99 = arith.constant 0.000000e+00 : bf16
    %141 = vector.broadcast %cst_99 : bf16 to vector<32x64xbf16>
    %142 = vector.shape_cast %140 : vector<32x1xi1> to vector<32x1xi1>
    %143 = vector.broadcast %142 : vector<32x1xi1> to vector<32x64xi1>
    %144 = arith.select %143, %139, %141 : vector<32x64xi1>, vector<32x64xbf16>
    %c6 = arith.constant 6 : index
    %c0_100 = arith.constant 0 : index
    %c0_101 = arith.constant 0 : index
    %145 = vector.load %arg5[%c6, %c0_100, %c0_101] : memref<9x64x128xbf16, #tpu.memory_space<vmem>>, vector<1x64x128xbf16>
    %146 = vector.shape_cast %145 : vector<1x64x128xbf16> to vector<64x128xbf16>
    %cst_102 = arith.constant dense<0.000000e+00> : vector<32x128xf32>
    %147 = tpu.matmul %144, %146, %cst_102 {dimension_numbers = #tpu.dot_dimension_numbers<[1], [0], [0], [1], [0, 0, 1, 1], [], []>} : vector<32x64xbf16>, vector<64x128xbf16>, vector<32x128xf32> -> vector<32x128xf32>
    %148 = arith.addf %138, %147 : vector<32x128xf32>
    %c0_103 = arith.constant 0 : index
    %c0_104 = arith.constant 0 : index
    %149 = vector.load %arg13[%c0_103, %c0_104] : memref<32x128xf32, #tpu.memory_space<vmem>>, vector<32x128xf32>
    tpu.vector_store %arg13[%c0_103, %c0_104], %148 {strides = array<i32>} : memref<32x128xf32, #tpu.memory_space<vmem>>, vector<32x128xf32>,
    %c0_105 = arith.constant 0 : index
    %c0_106 = arith.constant 0 : index
    %150 = vector.load %arg13[%c0_105, %c0_106] : memref<32x128xf32, #tpu.memory_space<vmem>>, vector<32x128xf32>
    %c12 = arith.constant 12 : index
    %c0_107 = arith.constant 0 : index
    %151 = vector.load %arg12[%c12, %c0_107] : memref<48x64xbf16, #tpu.memory_space<vmem>>, vector<32x64xbf16>
    %cst_108 = arith.constant 0.000000e+00 : bf16
    %152 = vector.broadcast %cst_108 : bf16 to vector<32x64xbf16>
    %153 = vector.shape_cast %69 : vector<32x1xi1> to vector<32x1xi1>
    %154 = vector.broadcast %153 : vector<32x1xi1> to vector<32x64xi1>
    %155 = arith.select %154, %151, %152 : vector<32x64xi1>, vector<32x64xbf16>
    %c7_109 = arith.constant 7 : index
    %c0_110 = arith.constant 0 : index
    %c0_111 = arith.constant 0 : index
    %156 = vector.load %arg5[%c7_109, %c0_110, %c0_111] : memref<9x64x128xbf16, #tpu.memory_space<vmem>>, vector<1x64x128xbf16>
    %157 = vector.shape_cast %156 : vector<1x64x128xbf16> to vector<64x128xbf16>
    %cst_112 = arith.constant dense<0.000000e+00> : vector<32x128xf32>
    %158 = tpu.matmul %155, %157, %cst_112 {dimension_numbers = #tpu.dot_dimension_numbers<[1], [0], [0], [1], [0, 0, 1, 1], [], []>} : vector<32x64xbf16>, vector<64x128xbf16>, vector<32x128xf32> -> vector<32x128xf32>
    %159 = arith.addf %150, %158 : vector<32x128xf32>
    %c0_113 = arith.constant 0 : index
    %c0_114 = arith.constant 0 : index
    %160 = vector.load %arg13[%c0_113, %c0_114] : memref<32x128xf32, #tpu.memory_space<vmem>>, vector<32x128xf32>
    tpu.vector_store %arg13[%c0_113, %c0_114], %159 {strides = array<i32>} : memref<32x128xf32, #tpu.memory_space<vmem>>, vector<32x128xf32>,
    %c0_115 = arith.constant 0 : index
    %c0_116 = arith.constant 0 : index
    %161 = vector.load %arg13[%c0_115, %c0_116] : memref<32x128xf32, #tpu.memory_space<vmem>>, vector<32x128xf32>
    %c13 = arith.constant 13 : index
    %c0_117 = arith.constant 0 : index
    %162 = vector.load %arg12[%c13, %c0_117] : memref<48x64xbf16, #tpu.memory_space<vmem>>, vector<32x64xbf16>
    %163 = arith.andi %69, %65 : vector<32x1xi1>
    %cst_118 = arith.constant 0.000000e+00 : bf16
    %164 = vector.broadcast %cst_118 : bf16 to vector<32x64xbf16>
    %165 = vector.shape_cast %163 : vector<32x1xi1> to vector<32x1xi1>
    %166 = vector.broadcast %165 : vector<32x1xi1> to vector<32x64xi1>
    %167 = arith.select %166, %162, %164 : vector<32x64xi1>, vector<32x64xbf16>
    %c8_119 = arith.constant 8 : index
    %c0_120 = arith.constant 0 : index
    %c0_121 = arith.constant 0 : index
    %168 = vector.load %arg5[%c8_119, %c0_120, %c0_121] : memref<9x64x128xbf16, #tpu.memory_space<vmem>>, vector<1x64x128xbf16>
    %169 = vector.shape_cast %168 : vector<1x64x128xbf16> to vector<64x128xbf16>
    %cst_122 = arith.constant dense<0.000000e+00> : vector<32x128xf32>
    %170 = tpu.matmul %167, %169, %cst_122 {dimension_numbers = #tpu.dot_dimension_numbers<[1], [0], [0], [1], [0, 0, 1, 1], [], []>} : vector<32x64xbf16>, vector<64x128xbf16>, vector<32x128xf32> -> vector<32x128xf32>
    %171 = arith.addf %161, %170 : vector<32x128xf32>
    %c0_123 = arith.constant 0 : index
    %c0_124 = arith.constant 0 : index
    %172 = vector.load %arg13[%c0_123, %c0_124] : memref<32x128xf32, #tpu.memory_space<vmem>>, vector<32x128xf32>
    tpu.vector_store %arg13[%c0_123, %c0_124], %171 {strides = array<i32>} : memref<32x128xf32, #tpu.memory_space<vmem>>, vector<32x128xf32>,
    %c0_125 = arith.constant 0 : index
    %c0_126 = arith.constant 0 : index
    %173 = vector.load %arg13[%c0_125, %c0_126] : memref<32x128xf32, #tpu.memory_space<vmem>>, vector<32x128xf32>
    %c0_127 = arith.constant 0 : index
    %c0_128 = arith.constant 0 : index
    %c0_129 = arith.constant 0 : index
    %174 = vector.load %arg10[%c0_127, %c0_128, %c0_129] : memref<1x32x128xbf16, #tpu.memory_space<vmem>>, vector<1x32x128xbf16>
    %175 = vector.shape_cast %174 : vector<1x32x128xbf16> to vector<32x128xbf16>
    %176 = arith.extf %175 : vector<32x128xbf16> to vector<32x128xf32>
    %177 = arith.addf %173, %176 : vector<32x128xf32>
    %178 = arith.truncf %177 : vector<32x128xf32> to vector<32x128xbf16>
    %c0_130 = arith.constant 0 : index
    %c0_131 = arith.constant 0 : index
    %c0_132 = arith.constant 0 : index
    %179 = vector.load %arg11[%c0_130, %c0_131, %c0_132] : memref<1x32x128xbf16, #tpu.memory_space<vmem>>, vector<1x32x128xbf16>
    %180 = vector.shape_cast %179 : vector<1x32x128xbf16> to vector<32x128xbf16>
    %181 = vector.shape_cast %178 : vector<32x128xbf16> to vector<1x32x128xbf16>
    tpu.vector_store %arg11[%c0_130, %c0_131, %c0_132], %181 {strides = array<i32>} : memref<1x32x128xbf16, #tpu.memory_space<vmem>>, vector<1x32x128xbf16>,
    return
  }
  func.func @transform_0(%arg0: i32, %arg1: i32) -> (i32, i32, i32) {
    %c0_i32 = arith.constant 0 : i32
    %c0_i32_0 = arith.constant 0 : i32
    return %arg0, %arg1, %c0_i32 : i32, i32, i32
  }
  func.func @transform_1(%arg0: i32, %arg1: i32) -> (i32, i32, i32) {
    %c4_i32 = arith.constant 4 : i32
    %0 = arith.muli %arg1, %c4_i32 : i32
    %c1_i32 = arith.constant 1 : i32
    %1 = arith.subi %0, %c1_i32 : i32
    %c0_i32 = arith.constant 0 : i32
    %c3_i32 = arith.constant 3 : i32
    %2 = arith.maxsi %c0_i32, %1 : i32
    %3 = arith.minsi %c3_i32, %2 : i32
    %c0_i32_0 = arith.constant 0 : i32
    %c0_i32_1 = arith.constant 0 : i32
    return %arg0, %3, %c0_i32_0 : i32, i32, i32
  }
  func.func @transform_2(%arg0: i32, %arg1: i32) -> (i32, i32, i32) {
    %c1_i32 = arith.constant 1 : i32
    %0 = arith.addi %arg1, %c1_i32 : i32
    %c4_i32 = arith.constant 4 : i32
    %1 = arith.muli %0, %c4_i32 : i32
    %c0_i32 = arith.constant 0 : i32
    %c3_i32 = arith.constant 3 : i32
    %2 = arith.maxsi %c0_i32, %1 : i32
    %3 = arith.minsi %c3_i32, %2 : i32
    %c0_i32_0 = arith.constant 0 : i32
    %c0_i32_1 = arith.constant 0 : i32
    return %arg0, %3, %c0_i32_0 : i32, i32, i32
  }
  func.func @transform_3(%arg0: i32, %arg1: i32) -> (i32, i32, i32) {
    %c0_i32 = arith.constant 0 : i32
    %c0_i32_0 = arith.constant 0 : i32
    %c0_i32_1 = arith.constant 0 : i32
    %c0_i32_2 = arith.constant 0 : i32
    return %c0_i32, %c0_i32_0, %c0_i32_1 : i32, i32, i32
  }
  func.func @transform_4(%arg0: i32, %arg1: i32) -> (i32, i32) {
    %c0_i32 = arith.constant 0 : i32
    %c0_i32_0 = arith.constant 0 : i32
    %c0_i32_1 = arith.constant 0 : i32
    return %c0_i32, %c0_i32_0 : i32, i32
  }
  func.func @transform_5(%arg0: i32, %arg1: i32) -> (i32, i32) {
    %c0_i32 = arith.constant 0 : i32
    %c0_i32_0 = arith.constant 0 : i32
    %c0_i32_1 = arith.constant 0 : i32
    return %c0_i32, %c0_i32_0 : i32, i32
  }
  func.func @transform_6(%arg0: i32, %arg1: i32) -> (i32, i32, i32) {
    %c0_i32 = arith.constant 0 : i32
    %c0_i32_0 = arith.constant 0 : i32
    %c0_i32_1 = arith.constant 0 : i32
    return %arg0, %c0_i32, %c0_i32_0 : i32, i32, i32
  }
  func.func @transform_7(%arg0: i32, %arg1: i32) -> (i32, i32, i32) {
    %c0_i32 = arith.constant 0 : i32
    %c0_i32_0 = arith.constant 0 : i32
    %c0_i32_1 = arith.constant 0 : i32
    return %arg0, %c0_i32, %c0_i32_0 : i32, i32, i32
  }
  func.func @transform_8(%arg0: i32, %arg1: i32) -> (i32, i32, i32) {
    %c0_i32 = arith.constant 0 : i32
    %c0_i32_0 = arith.constant 0 : i32
    return %arg0, %arg1, %c0_i32 : i32, i32, i32
  }
  func.func @transform_9(%arg0: i32, %arg1: i32) -> (i32, i32, i32) {
    %c0_i32 = arith.constant 0 : i32
    %c0_i32_0 = arith.constant 0 : i32
    return %arg0, %arg1, %c0_i32 : i32, i32, i32
  }
}

</mosaic_0001>

<llo_original>
// kernel: tpu_custom_call.1
$region0: #{tpu_custom_call.1}
  #allocation0 [shape = 'u32[]', space=smem, size = 0x4, offset = 0x4, fixed_abs, tag = 'smem constant byte address 0x4 - core index']
  #allocation1 [shape = 'u32[144,128]{1,0:T(1,128)}', space=vmem, size = 0x12000, scoped, tag = 'internal scratch']
  #allocation2 [shape = 'bf16[48,64]{1,0:T(16,128)(2,1)}', space=vmem, size = 0x3000, scoped, tag = 'scratch operand']
  #allocation3 [shape = 'f32[32,128]{1,0:T(8,128)}', space=vmem, size = 0x4000, scoped, tag = 'scratch operand']
  %s0 = inlined_call_operand.vmem [shape: bf16[2,32,64], index: 0, kind: input, shape index: {}]
  %s1 = inlined_call_operand.hbm [shape: bf16[2,32,64], index: 1, kind: input, shape index: {}]
  %s2 = inlined_call_operand.hbm [shape: bf16[2,32,64], index: 2, kind: input, shape index: {}]
  %s3 = inlined_call_operand.hbm [shape: bf16[9,64,128], index: 3, kind: input, shape index: {}]
  %s4 = inlined_call_operand.vmem [shape: f32[1,128], index: 4, kind: input, shape index: {}]
  %s5 = inlined_call_operand.vmem [shape: s32[32,1], index: 5, kind: input, shape index: {}]
  %s6 = inlined_call_operand.vmem [shape: f32[2,1,64], index: 6, kind: input, shape index: {}]
  %s7 = inlined_call_operand.vmem [shape: f32[2,1,64], index: 7, kind: input, shape index: {}]
  %s8 = inlined_call_operand.hbm [shape: bf16[2,32,128], index: 8, kind: input, shape index: {}]
  %s9 = inlined_call_operand.hbm [shape: bf16[2,32,128], index: 9, kind: output, shape index: {}]
  %s10 = sld [smem:[#allocation0]]
  $region85: #{tpu_custom_call.1} parent=0
    _
  %s12 = ssub.s32 1, %s10
  %s13 = scalar_select 0, %s12, %s10
  $region1: #{tpu_custom_call.1} parent=0
    #allocation4 [shape = 'u8[4096]{0}', space=vmem, size = 0x1000, scoped, tag = 'input window, operand 1']
    #allocation5 [shape = 's32[2]{0}', space=sflag, size = 0x8, scoped, tag = 'scoped memory for tpu_custom_call.1']
    #allocation6 [shape = 's32[2]{0}', space=sflag, size = 0x8, scoped, tag = 'scoped memory for tpu_custom_call.1']
    #allocation7 [shape = 'u8[4096]{0}', space=vmem, size = 0x1000, scoped, tag = 'input window, operand 2']
    #allocation8 [shape = 's32[2]{0}', space=sflag, size = 0x8, scoped, tag = 'scoped memory for tpu_custom_call.1']
    #allocation9 [shape = 'u8[147456]{0}', space=vmem, size = 0x24000, scoped, tag = 'input window, operand 3, single buffered']
    #allocation10 [shape = 'u8[16384]{0}', space=vmem, size = 0x4000, scoped, tag = 'input window, operand 8']
    #allocation11 [shape = 's32[2]{0}', space=sflag, size = 0x8, scoped, tag = 'scoped memory for tpu_custom_call.1']
    #allocation12 [shape = 'u8[16384]{0}', space=vmem, size = 0x4000, scoped, tag = 'output window, operand 0']
    %14 = vsyncpa [#allocation5], 0
    %s15 = scalar_lea.sflag [#allocation5], 1
    %16 = vsyncpa %s15, 0
    %17 = vsyncpa [#allocation8], 0
    %s18 = scalar_lea.sflag [#allocation8], 1
    %19 = vsyncpa %s18, 0
    %20 = vsyncpa [#allocation11], 0
    %s21 = scalar_lea.sflag [#allocation11], 1
    %22 = vsyncpa %s21, 0
    %23 = vsyncpa [#allocation6], 0
    %s24 = scalar_lea.sflag [#allocation6], 1
    %25 = vsyncpa %s24, 0
    loop: start=0, step=1, limit=4
    $region2: #{tpu_custom_call.1} parent=1 // loop_pre_header
      _
    $region3: #{tpu_custom_call.1} parent=1 // loop_header
      %s27 = sphi 0, %s31
      %p28 = scmp.ge.s32.totalorder %s27, 4
      %s34 = sphi 0, %s46
      %s35 = sphi 0, %s42
      %s36 = sphi 0, %s34
      %s37 = sphi 0, %s35
      %s38 = sphi 0, %s36
      %s39 = sphi 0, %s37
      %s51 = sphi 0, %s53
      %s54 = sphi 0, %s51
      %s55 = sphi 0, %s54
      %s71 = sphi 0, %s55
      %s91 = sphi 0, %s93
      %s94 = sphi 0, %s91
      %s95 = sphi 0, %s94
      %s111 = sphi 0, %s95
      %s131 = sphi 0, %s133
      %s134 = sphi 0, %s131
      %s135 = sphi 0, %s134
      %s151 = sphi 0, %s135
      %s155 = sphi 0, %s155
      %s157 = sphi 0, %s155
      %s158 = sphi 0, %s157
      %s172 = sphi 0, %s158
      %s176 = sphi 0, %s176
      %s178 = sphi 0, %s176
      %s179 = sphi 0, %s178
      %s193 = sphi 0, %s179
      %s197 = sphi 0, %s197
      %s199 = sphi 0, %s197
      %s200 = sphi 0, %s199
      %s214 = sphi 0, %s200
      %s220 = sphi 0, %s222
      %s223 = sphi 0, %s220
      %s224 = sphi 0, %s223
      %s240 = sphi 0, %s224
      %s246 = sphi 0, %s248
      %s249 = sphi 0, %s246
      %s250 = sphi 0, %s249
      %s266 = sphi 0, %s250
      %s274 = sphi 0, %s276
      %s277 = sphi 0, %s274
      %s278 = sphi 0, %s277
      %s294 = sphi 0, %s278
      %s302 = sphi 0, %s304
      %s305 = sphi 0, %s302
      %s306 = sphi 0, %s305
      %s322 = sphi 0, %s306
    $region4: #{tpu_custom_call.1} parent=1 // loop_header_branch
      %30 = sbr.rel (%p28) target = $region8
    $region5: #{tpu_custom_call.1} parent=1 // loop_body
      %s32 = ssub.s32 %s27, 1
      %s33 = ssub.s32 %s27, 2
      %s40 = sadd.s32 1, %s35
      %p41 = scmp.ge.s32.totalorder %s40, 1
      %s42 = scalar_select %p41, 0, %s40
      %s43 = sadd.s32 1, %s34
      %s44 = scalar_select %p41, %s43, %s34
      %p45 = scmp.ge.s32.totalorder %s44, 2
      %s46 = scalar_select %p45, 0, %s44
      %s47 = ssub.s32 %s34, %s46
      %s48 = ssub.s32 %s35, %s42
      %s49 = sor.u32 %s47, %s48
      %p50 = scmp.eq.s32.totalorder %s49, 0
      %s52 = sadd.s32 %s51, 1
      %s53 = scalar_select %p50, %s51, %s52
      %p56 = pneg %p50
      %p57 = scmp.eq.s32.totalorder %s27, 1
      %p58 = por %p56, %p57
      %p59 = scmp.ne.s32.totalorder %s51, %s54
      %p60 = scmp.eq.s32.totalorder %s27, 0
      %p61 = por %p59, %p60
      %p62 = scmp.ne.s32.totalorder %s51, %s54
      %p63 = scmp.eq.s32.totalorder %s32, 1
      %p64 = por %p62, %p63
      %p65 = scmp.ne.s32.totalorder %s54, %s55
      %p66 = scmp.eq.s32.totalorder %s32, 0
      %p67 = por %p65, %p66
      %p68 = scmp.ne.s32.totalorder %s54, %s55
      %p69 = scmp.eq.s32.totalorder %s33, 1
      %p70 = por %p68, %p69
      %p72 = scmp.ne.s32.totalorder %s55, %s71
      %p73 = scmp.eq.s32.totalorder %s33, 0
      %p74 = por %p72, %p73
      %s75 = smul.u32 %s35, 4
      %s76 = ssub.s32 %s75, 1
      %p77 = scmp.gt.s32.totalorder %s76, 0
      %s78 = scalar_select %p77, %s76, 0
      %p79 = scmp.lt.s32.totalorder %s78, 3
      %s80 = scalar_select %p79, %s78, 3
      %s81 = smul.u32 %s42, 4
      %s82 = ssub.s32 %s81, 1
      %p83 = scmp.gt.s32.totalorder %s82, 0
      %s84 = scalar_select %p83, %s82, 0
      %p85 = scmp.lt.s32.totalorder %s84, 3
      %s86 = scalar_select %p85, %s84, 3
      %s87 = ssub.s32 %s34, %s46
      %s88 = ssub.s32 %s80, %s86
      %s89 = sor.u32 %s87, %s88
      %p90 = scmp.eq.s32.totalorder %s89, 0
      %s92 = sadd.s32 %s91, 1
      %s93 = scalar_select %p90, %s91, %s92
      %p96 = pneg %p90
      %p97 = scmp.eq.s32.totalorder %s27, 1
      %p98 = por %p96, %p97
      %p99 = scmp.ne.s32.totalorder %s91, %s94
      %p100 = scmp.eq.s32.totalorder %s27, 0
      %p101 = por %p99, %p100
      %p102 = scmp.ne.s32.totalorder %s91, %s94
      %p103 = scmp.eq.s32.totalorder %s32, 1
      %p104 = por %p102, %p103
      %p105 = scmp.ne.s32.totalorder %s94, %s95
      %p106 = scmp.eq.s32.totalorder %s32, 0
      %p107 = por %p105, %p106
      %p108 = scmp.ne.s32.totalorder %s94, %s95
      %p109 = scmp.eq.s32.totalorder %s33, 1
      %p110 = por %p108, %p109
      %p112 = scmp.ne.s32.totalorder %s95, %s111
      %p113 = scmp.eq.s32.totalorder %s33, 0
      %p114 = por %p112, %p113
      %s115 = sadd.s32 %s35, 1
      %s116 = smul.u32 %s115, 4
      %p117 = scmp.gt.s32.totalorder %s116, 0
      %s118 = scalar_select %p117, %s116, 0
      %p119 = scmp.lt.s32.totalorder %s118, 3
      %s120 = scalar_select %p119, %s118, 3
      %s121 = sadd.s32 %s42, 1
      %s122 = smul.u32 %s121, 4
      %p123 = scmp.gt.s32.totalorder %s122, 0
      %s124 = scalar_select %p123, %s122, 0
      %p125 = scmp.lt.s32.totalorder %s124, 3
      %s126 = scalar_select %p125, %s124, 3
      %s127 = ssub.s32 %s34, %s46
      %s128 = ssub.s32 %s120, %s126
      %s129 = sor.u32 %s127, %s128
      %p130 = scmp.eq.s32.totalorder %s129, 0
      %s132 = sadd.s32 %s131, 1
      %s133 = scalar_select %p130, %s131, %s132
      %p136 = pneg %p130
      %p137 = scmp.eq.s32.totalorder %s27, 1
      %p138 = por %p136, %p137
      %p139 = scmp.ne.s32.totalorder %s131, %s134
      %p140 = scmp.eq.s32.totalorder %s27, 0
      %p141 = por %p139, %p140
      %p142 = scmp.ne.s32.totalorder %s131, %s134
      %p143 = scmp.eq.s32.totalorder %s32, 1
      %p144 = por %p142, %p143
      %p145 = scmp.ne.s32.totalorder %s134, %s135
      %p146 = scmp.eq.s32.totalorder %s32, 0
      %p147 = por %p145, %p146
      %p148 = scmp.ne.s32.totalorder %s134, %s135
      %p149 = scmp.eq.s32.totalorder %s33, 1
      %p150 = por %p148, %p149
      %p152 = scmp.ne.s32.totalorder %s135, %s151
      %p153 = scmp.eq.s32.totalorder %s33, 0
      %p154 = por %p152, %p153
      %s156 = sadd.s32 %s155, 1
      %p159 = scmp.eq.s32.totalorder %s27, 1
      %p160 = scmp.ne.s32.totalorder %s155, %s157
      %p161 = scmp.eq.s32.totalorder %s27, 0
      %p162 = por %p160, %p161
      %p163 = scmp.ne.s32.totalorder %s155, %s157
      %p164 = scmp.eq.s32.totalorder %s32, 1
      %p165 = por %p163, %p164
      %p166 = scmp.ne.s32.totalorder %s157, %s158
      %p167 = scmp.eq.s32.totalorder %s32, 0
      %p168 = por %p166, %p167
      %p169 = scmp.ne.s32.totalorder %s157, %s158
      %p170 = scmp.eq.s32.totalorder %s33, 1
      %p171 = por %p169, %p170
      %p173 = scmp.ne.s32.totalorder %s158, %s172
      %p174 = scmp.eq.s32.totalorder %s33, 0
      %p175 = por %p173, %p174
      %s177 = sadd.s32 %s176, 1
      %p180 = scmp.eq.s32.totalorder %s27, 1
      %p181 = scmp.ne.s32.totalorder %s176, %s178
      %p182 = scmp.eq.s32.totalorder %s27, 0
      %p183 = por %p181, %p182
      %p184 = scmp.ne.s32.totalorder %s176, %s178
      %p185 = scmp.eq.s32.totalorder %s32, 1
      %p186 = por %p184, %p185
      %p187 = scmp.ne.s32.totalorder %s178, %s179
      %p188 = scmp.eq.s32.totalorder %s32, 0
      %p189 = por %p187, %p188
      %p190 = scmp.ne.s32.totalorder %s178, %s179
      %p191 = scmp.eq.s32.totalorder %s33, 1
      %p192 = por %p190, %p191
      %p194 = scmp.ne.s32.totalorder %s179, %s193
      %p195 = scmp.eq.s32.totalorder %s33, 0
      %p196 = por %p194, %p195
      %s198 = sadd.s32 %s197, 1
      %p201 = scmp.eq.s32.totalorder %s27, 1
      %p202 = scmp.ne.s32.totalorder %s197, %s199
      %p203 = scmp.eq.s32.totalorder %s27, 0
      %p204 = por %p202, %p203
      %p205 = scmp.ne.s32.totalorder %s197, %s199
      %p206 = scmp.eq.s32.totalorder %s32, 1
      %p207 = por %p205, %p206
      %p208 = scmp.ne.s32.totalorder %s199, %s200
      %p209 = scmp.eq.s32.totalorder %s32, 0
      %p210 = por %p208, %p209
      %p211 = scmp.ne.s32.totalorder %s199, %s200
      %p212 = scmp.eq.s32.totalorder %s33, 1
      %p213 = por %p211, %p212
      %p215 = scmp.ne.s32.totalorder %s200, %s214
      %p216 = scmp.eq.s32.totalorder %s33, 0
      %p217 = por %p215, %p216
      %s218 = ssub.s32 %s34, %s46
      %p219 = scmp.eq.s32.totalorder %s218, 0
      %s221 = sadd.s32 %s220, 1
      %s222 = scalar_select %p219, %s220, %s221
      %p225 = pneg %p219
      %p226 = scmp.eq.s32.totalorder %s27, 1
      %p227 = por %p225, %p226
      %p228 = scmp.ne.s32.totalorder %s220, %s223
      %p229 = scmp.eq.s32.totalorder %s27, 0
      %p230 = por %p228, %p229
      %p231 = scmp.ne.s32.totalorder %s220, %s223
      %p232 = scmp.eq.s32.totalorder %s32, 1
      %p233 = por %p231, %p232
      %p234 = scmp.ne.s32.totalorder %s223, %s224
      %p235 = scmp.eq.s32.totalorder %s32, 0
      %p236 = por %p234, %p235
      %p237 = scmp.ne.s32.totalorder %s223, %s224
      %p238 = scmp.eq.s32.totalorder %s33, 1
      %p239 = por %p237, %p238
      %p241 = scmp.ne.s32.totalorder %s224, %s240
      %p242 = scmp.eq.s32.totalorder %s33, 0
      %p243 = por %p241, %p242
      %s244 = ssub.s32 %s34, %s46
      %p245 = scmp.eq.s32.totalorder %s244, 0
      %s247 = sadd.s32 %s246, 1
      %s248 = scalar_select %p245, %s246, %s247
      %p251 = pneg %p245
      %p252 = scmp.eq.s32.totalorder %s27, 1
      %p253 = por %p251, %p252
      %p254 = scmp.ne.s32.totalorder %s246, %s249
      %p255 = scmp.eq.s32.totalorder %s27, 0
      %p256 = por %p254, %p255
      %p257 = scmp.ne.s32.totalorder %s246, %s249
      %p258 = scmp.eq.s32.totalorder %s32, 1
      %p259 = por %p257, %p258
      %p260 = scmp.ne.s32.totalorder %s249, %s250
      %p261 = scmp.eq.s32.totalorder %s32, 0
      %p262 = por %p260, %p261
      %p263 = scmp.ne.s32.totalorder %s249, %s250
      %p264 = scmp.eq.s32.totalorder %s33, 1
      %p265 = por %p263, %p264
      %p267 = scmp.ne.s32.totalorder %s250, %s266
      %p268 = scmp.eq.s32.totalorder %s33, 0
      %p269 = por %p267, %p268
      %s270 = ssub.s32 %s34, %s46
      %s271 = ssub.s32 %s35, %s42
      %s272 = sor.u32 %s270, %s271
      %p273 = scmp.eq.s32.totalorder %s272, 0
      %s275 = sadd.s32 %s274, 1
      %s276 = scalar_select %p273, %s274, %s275
      %p279 = pneg %p273
      %p280 = scmp.eq.s32.totalorder %s27, 1
      %p281 = por %p279, %p280
      %p282 = scmp.ne.s32.totalorder %s274, %s277
      %p283 = scmp.eq.s32.totalorder %s27, 0
      %p284 = por %p282, %p283
      %p285 = scmp.ne.s32.totalorder %s274, %s277
      %p286 = scmp.eq.s32.totalorder %s32, 1
      %p287 = por %p285, %p286
      %p288 = scmp.ne.s32.totalorder %s277, %s278
      %p289 = scmp.eq.s32.totalorder %s32, 0
      %p290 = por %p288, %p289
      %p291 = scmp.ne.s32.totalorder %s277, %s278
      %p292 = scmp.eq.s32.totalorder %s33, 1
      %p293 = por %p291, %p292
      %p295 = scmp.ne.s32.totalorder %s278, %s294
      %p296 = scmp.eq.s32.totalorder %s33, 0
      %p297 = por %p295, %p296
      %s298 = ssub.s32 %s34, %s46
      %s299 = ssub.s32 %s35, %s42
      %s300 = sor.u32 %s298, %s299
      %p301 = scmp.eq.s32.totalorder %s300, 0
      %s303 = sadd.s32 %s302, 1
      %s304 = scalar_select %p301, %s302, %s303
      %p307 = pneg %p301
      %p308 = scmp.eq.s32.totalorder %s27, 1
      %p309 = por %p307, %p308
      %p310 = scmp.ne.s32.totalorder %s302, %s305
      %p311 = scmp.eq.s32.totalorder %s27, 0
      %p312 = por %p310, %p311
      %p313 = scmp.ne.s32.totalorder %s302, %s305
      %p314 = scmp.eq.s32.totalorder %s32, 1
      %p315 = por %p313, %p314
      %p316 = scmp.ne.s32.totalorder %s305, %s306
      %p317 = scmp.eq.s32.totalorder %s32, 0
      %p318 = por %p316, %p317
      %p319 = scmp.ne.s32.totalorder %s305, %s306
      %p320 = scmp.eq.s32.totalorder %s33, 1
      %p321 = por %p319, %p320
      %p323 = scmp.ne.s32.totalorder %s306, %s322
      %p324 = scmp.eq.s32.totalorder %s33, 0
      %p325 = por %p323, %p324
      %p326 = scmp.le.s32.totalorder 1, %s27
      %p327 = scmp.lt.s32.totalorder %s27, 3
      %p328 = pnand %p326, %p327
      %p329 = pneg %p328
      // Predicated region
      $region9: #{tpu_custom_call.1} parent=5 // pred_check
        _
      $region10: #{tpu_custom_call.1} parent=5 // pred_check_branch
        %331 = sbr.rel (%p328) target = $region12
      $region11: #{tpu_custom_call.1} parent=5 // pred_region
        %s332 = ssub.s32 %s27, 1
        // Predicated region
        $region13: #{tpu_custom_call.1} parent=11 // pred_check
          %p333 = pneg %p168
        $region14: #{tpu_custom_call.1} parent=11 // pred_check_branch
          %335 = sbr.rel (%p333) target = $region16
        $region15: #{tpu_custom_call.1} parent=11 // pred_region
          %s337 = ssub.s32 4608, 4608
          %338 = vsyncadd [#allocation8], %s337
          %s339 = sshll.u32 [#allocation9], 4
          %s340 = int_to_ptr.vmem [resolvable:$true] %s339
          %345 = dma.hbm_to_vmem [thread:$0]  %s3, 4608, %s340, [#allocation8], 64, 64, 4
        $region16: #{tpu_custom_call.1} parent=11 // pred_fallthru
          _
        // Predicated region
        $region17: #{tpu_custom_call.1} parent=11 // pred_check
          %p346 = pneg %p189
        $region18: #{tpu_custom_call.1} parent=11 // pred_check_branch
          %348 = sbr.rel (%p346) target = $region20
        $region19: #{tpu_custom_call.1} parent=11 // pred_region
          _
        $region20: #{tpu_custom_call.1} parent=11 // pred_fallthru
          _
        // Predicated region
        $region21: #{tpu_custom_call.1} parent=11 // pred_check
          %p349 = pneg %p210
        $region22: #{tpu_custom_call.1} parent=11 // pred_check_branch
          %351 = sbr.rel (%p349) target = $region24
        $region23: #{tpu_custom_call.1} parent=11 // pred_region
          _
        $region24: #{tpu_custom_call.1} parent=11 // pred_fallthru
          _
      $region12: #{tpu_custom_call.1} parent=5 // pred_fallthru
        _
      %p352 = scmp.lt.s32.totalorder %s27, 2
      // Predicated region
      $region25: #{tpu_custom_call.1} parent=5 // pred_check
        %p353 = pneg %p352
      $region26: #{tpu_custom_call.1} parent=5 // pred_check_branch
        %355 = sbr.rel (%p353) target = $region28
      $region27: #{tpu_custom_call.1} parent=5 // pred_region
        // Predicated region
        $region29: #{tpu_custom_call.1} parent=27 // pred_check
          %p356 = pneg %p61
        $region30: #{tpu_custom_call.1} parent=27 // pred_check_branch
          %358 = sbr.rel (%p356) target = $region32
        $region31: #{tpu_custom_call.1} parent=27 // pred_region
          %s359 = smul.u32 4, %s35
          %p360 = scmp.lt.s32.totalorder %s34, 1
          %s361 = scalar_select %p360, %s34, 1
          %p362 = scmp.lt.s32.totalorder %s359, 3
          %s363 = scalar_select %p362, %s359, 3
          %s364 = smul.addr %s361, 4
          %s365 = sadd.s32 %s363, %s364
          %s366 = smul.addr %s365, 4
          %s367 = scalar_lea.vmem %s0, %s366
          %s368 = smul.u32 4, %s35
        $region32: #{tpu_custom_call.1} parent=27 // pred_fallthru
          _
        // Predicated region
        $region33: #{tpu_custom_call.1} parent=27 // pred_check
          %p369 = pneg %p101
        $region34: #{tpu_custom_call.1} parent=27 // pred_check_branch
          %371 = sbr.rel (%p369) target = $region36
        $region35: #{tpu_custom_call.1} parent=27 // pred_region
          %s372 = sand.u32 %s91, 1
          %s373 = scalar_lea.sflag [#allocation5], %s372
          %s374 = sand.u32 %s91, 1
          %s375 = smul.addr %s374, 4
          %s376 = scalar_lea.vmem [#allocation4], %s375
          %s377 = smul.u32 %s35, 4
          %s378 = ssub.s32 %s377, 1
          %p379 = scmp.gt.s32.totalorder %s378, 0
          %s380 = scalar_select %p379, %s378, 0
          %p381 = scmp.lt.s32.totalorder %s380, 3
          %s382 = scalar_select %p381, %s380, 3
          %s384 = ssub.s32 64, 64
          %385 = vsyncadd %s373, %s384
          %s386 = smul.addr %s34, 4
          %s387 = sadd.s32 %s382, %s386
          %s388 = smul.addr %s387, 64
          %s389 = scalar_lea.hbm %s1, %s388
          %s391 = sshll.u32 %s376, 4
          %s392 = int_to_ptr.vmem [resolvable:$true] %s391
          %394 = dma.hbm_to_vmem [thread:$0]  %s389, 64, %s392, %s373
        $region36: #{tpu_custom_call.1} parent=27 // pred_fallthru
          _
        // Predicated region
        $region37: #{tpu_custom_call.1} parent=27 // pred_check
          %p395 = pneg %p141
        $region38: #{tpu_custom_call.1} parent=27 // pred_check_branch
          %397 = sbr.rel (%p395) target = $region40
        $region39: #{tpu_custom_call.1} parent=27 // pred_region
          %s398 = sand.u32 %s27, 1
          %s399 = scalar_lea.sflag [#allocation8], %s398
          %s400 = sand.u32 %s131, 1
          %s401 = smul.addr %s400, 4
          %s402 = scalar_lea.vmem [#allocation7], %s401
          %s403 = sadd.s32 %s35, 1
          %s404 = smul.u32 %s403, 4
          %p405 = scmp.gt.s32.totalorder %s404, 0
          %s406 = scalar_select %p405, %s404, 0
          %p407 = scmp.lt.s32.totalorder %s406, 3
          %s408 = scalar_select %p407, %s406, 3
          %s410 = ssub.s32 64, 64
          %411 = vsyncadd %s399, %s410
          %s412 = smul.addr %s34, 4
          %s413 = sadd.s32 %s408, %s412
          %s414 = smul.addr %s413, 64
          %s415 = scalar_lea.hbm %s2, %s414
          %s417 = sshll.u32 %s402, 4
          %s418 = int_to_ptr.vmem [resolvable:$true] %s417
          %420 = dma.hbm_to_vmem [thread:$0]  %s415, 64, %s418, %s399
        $region40: #{tpu_custom_call.1} parent=27 // pred_fallthru
          _
        // Predicated region
        $region41: #{tpu_custom_call.1} parent=27 // pred_check
          %p421 = pneg %p230
        $region42: #{tpu_custom_call.1} parent=27 // pred_check_branch
          %423 = sbr.rel (%p421) target = $region44
        $region43: #{tpu_custom_call.1} parent=27 // pred_region
          %p424 = scmp.lt.s32.totalorder %s34, 1
          %s425 = scalar_select %p424, %s34, 1
          %s426 = scalar_lea.vmem %s6, %s425
        $region44: #{tpu_custom_call.1} parent=27 // pred_fallthru
          _
        // Predicated region
        $region45: #{tpu_custom_call.1} parent=27 // pred_check
          %p427 = pneg %p256
        $region46: #{tpu_custom_call.1} parent=27 // pred_check_branch
          %429 = sbr.rel (%p427) target = $region48
        $region47: #{tpu_custom_call.1} parent=27 // pred_region
          %p430 = scmp.lt.s32.totalorder %s34, 1
          %s431 = scalar_select %p430, %s34, 1
          %s432 = scalar_lea.vmem %s7, %s431
        $region48: #{tpu_custom_call.1} parent=27 // pred_fallthru
          _
        // Predicated region
        $region49: #{tpu_custom_call.1} parent=27 // pred_check
          %p433 = pneg %p284
        $region50: #{tpu_custom_call.1} parent=27 // pred_check_branch
          %435 = sbr.rel (%p433) target = $region52
        $region51: #{tpu_custom_call.1} parent=27 // pred_region
          %s436 = sand.u32 %s274, 1
          %s437 = scalar_lea.sflag [#allocation11], %s436
          %s438 = sand.u32 %s274, 1
          %s439 = smul.addr %s438, 16
          %s440 = scalar_lea.vmem [#allocation10], %s439
          %s441 = smul.u32 4, %s35
          %s443 = ssub.s32 256, 256
          %444 = vsyncadd %s437, %s443
          %s445 = smul.addr %s34, 4
          %s446 = sadd.s32 %s441, %s445
          %s447 = smul.addr %s446, 64
          %s448 = scalar_lea.hbm %s8, %s447
          %s449 = sshll.u32 %s440, 4
          %s450 = int_to_ptr.vmem [resolvable:$true] %s449
          %455 = dma.hbm_to_vmem [thread:$0]  %s448, 256, %s450, %s437, 64, 64, 4
        $region52: #{tpu_custom_call.1} parent=27 // pred_fallthru
          _
      $region28: #{tpu_custom_call.1} parent=5 // pred_fallthru
        _
      %p456 = scmp.le.s32.totalorder 1, %s27
      %p457 = scmp.lt.s32.totalorder %s27, 3
      %p458 = pnand %p456, %p457
      %p459 = pneg %p458
      // Predicated region
      $region53: #{tpu_custom_call.1} parent=5 // pred_check
        _
      $region54: #{tpu_custom_call.1} parent=5 // pred_check_branch
        %461 = sbr.rel (%p458) target = $region56
      $region55: #{tpu_custom_call.1} parent=5 // pred_region
        %s462 = ssub.s32 %s27, 1
        %s463 = sand.u32 %s94, 1
        %s464 = scalar_lea.sflag [#allocation5], %s463
        %s465 = sand.u32 %s94, 1
        %s466 = smul.addr %s465, 4
        %s467 = scalar_lea.vmem [#allocation4], %s466
        // Predicated region
        $region57: #{tpu_custom_call.1} parent=55 // pred_check
          %p468 = pneg %p107
        $region58: #{tpu_custom_call.1} parent=55 // pred_check_branch
          %470 = sbr.rel (%p468) target = $region60
        $region59: #{tpu_custom_call.1} parent=55 // pred_region
          %471 = dma.done %s464, 64
        $region60: #{tpu_custom_call.1} parent=55 // pred_fallthru
          _
        %s472 = sand.u32 %s32, 1
        %s473 = scalar_lea.sflag [#allocation8], %s472
        %s474 = sand.u32 %s134, 1
        %s475 = smul.addr %s474, 4
        %s476 = scalar_lea.vmem [#allocation7], %s475
        // Predicated region
        $region61: #{tpu_custom_call.1} parent=55 // pred_check
          %p477 = pneg %p147
        $region62: #{tpu_custom_call.1} parent=55 // pred_check_branch
          %479 = sbr.rel (%p477) target = $region64
        $region63: #{tpu_custom_call.1} parent=55 // pred_region
          %480 = dma.done %s473, 64
        $region64: #{tpu_custom_call.1} parent=55 // pred_fallthru
          _
        // Predicated region
        $region65: #{tpu_custom_call.1} parent=55 // pred_check
          %p481 = pneg %p168
        $region66: #{tpu_custom_call.1} parent=55 // pred_check_branch
          %483 = sbr.rel (%p481) target = $region68
        $region67: #{tpu_custom_call.1} parent=55 // pred_region
          %484 = dma.done [#allocation8], 4608
        $region68: #{tpu_custom_call.1} parent=55 // pred_fallthru
          _
        %s485 = sand.u32 %s277, 1
        %s486 = scalar_lea.sflag [#allocation11], %s485
        %s487 = sand.u32 %s277, 1
        %s488 = smul.addr %s487, 16
        %s489 = scalar_lea.vmem [#allocation10], %s488
        // Predicated region
        $region69: #{tpu_custom_call.1} parent=55 // pred_check
          %p490 = pneg %p290
        $region70: #{tpu_custom_call.1} parent=55 // pred_check_branch
          %492 = sbr.rel (%p490) target = $region72
        $region71: #{tpu_custom_call.1} parent=55 // pred_region
          %493 = dma.done %s486, 256
        $region72: #{tpu_custom_call.1} parent=55 // pred_fallthru
          _
        %s494 = smul.u32 4, %s37
        %p495 = scmp.lt.s32.totalorder %s36, 1
        %s496 = scalar_select %p495, %s36, 1
        %p497 = scmp.lt.s32.totalorder %s494, 3
        %s498 = scalar_select %p497, %s494, 3
        %s499 = smul.addr %s496, 4
        %s500 = sadd.s32 %s498, %s499
        %s501 = smul.addr %s500, 4
        %s502 = scalar_lea.vmem %s0, %s501
        %p503 = pneg %p67
        %p504 = pneg %p64
        %s505 = sand.u32 %s94, 1
        %s506 = scalar_lea.sflag [#allocation5], %s505
        %s507 = sand.u32 %s94, 1
        %s508 = smul.addr %s507, 4
        %s509 = scalar_lea.vmem [#allocation4], %s508
        %p510 = pneg %p107
        %p511 = pneg %p104
        %s512 = sand.u32 %s32, 1
        %s513 = scalar_lea.sflag [#allocation8], %s512
        %s514 = sand.u32 %s134, 1
        %s515 = smul.addr %s514, 4
        %s516 = scalar_lea.vmem [#allocation7], %s515
        %p517 = pneg %p147
        %p518 = pneg %p144
        %p519 = pneg %p168
        %p520 = pneg %p165
        %p521 = pneg %p189
        %p522 = pneg %p186
        %p523 = pneg %p210
        %p524 = pneg %p207
        %p525 = scmp.lt.s32.totalorder %s36, 1
        %s526 = scalar_select %p525, %s36, 1
        %s527 = scalar_lea.vmem %s6, %s526
        %p528 = pneg %p236
        %p529 = pneg %p233
        %p530 = scmp.lt.s32.totalorder %s36, 1
        %s531 = scalar_select %p530, %s36, 1
        %s532 = scalar_lea.vmem %s7, %s531
        %p533 = pneg %p262
        %p534 = pneg %p259
        %s535 = sand.u32 %s277, 1
        %s536 = scalar_lea.sflag [#allocation11], %s535
        %s537 = sand.u32 %s277, 1
        %s538 = smul.addr %s537, 16
        %s539 = scalar_lea.vmem [#allocation10], %s538
        %p540 = pneg %p290
        %p541 = pneg %p287
        %p542 = pneg %p318
        %p543 = pneg %p315
        %s544 = sand.u32 %s305, 1
        %s545 = scalar_lea.sflag [#allocation6], %s544
        %s546 = sand.u32 %s305, 1
        %s547 = smul.addr %s546, 16
        %s548 = scalar_lea.vmem [#allocation12], %s547
        %s549 = smul.u32 4, %s37
        %p550 = scmp.lt.s32.totalorder %s36, 1
        %s551 = scalar_select %p550, %s36, 1
        %p552 = scmp.lt.s32.totalorder %s549, 3
        %s553 = scalar_select %p552, %s549, 3
        %s554 = smul.addr %s551, 4
        %s555 = sadd.s32 %s553, %s554
        %s556 = smul.addr %s555, 4
        %s557 = scalar_lea.vmem %s0, %s556
        %s558 = smul.u32 4, %s37
        %s559 = smul.u32 %s37, 4
        %s560 = ssub.s32 %s559, 1
        %p561 = scmp.gt.s32.totalorder %s560, 0
        %s562 = scalar_select %p561, %s560, 0
        %p563 = scmp.lt.s32.totalorder %s562, 3
        %s564 = scalar_select %p563, %s562, 3
        %s565 = sadd.s32 %s37, 1
        %s566 = smul.u32 %s565, 4
        %p567 = scmp.gt.s32.totalorder %s566, 0
        %s568 = scalar_select %p567, %s566, 0
        %p569 = scmp.lt.s32.totalorder %s568, 3
        %s570 = scalar_select %p569, %s568, 3
        %p571 = scmp.lt.s32.totalorder %s36, 1
        %s572 = scalar_select %p571, %s36, 1
        %s573 = scalar_lea.vmem %s6, %s572
        %p574 = scmp.lt.s32.totalorder %s36, 1
        %s575 = scalar_select %p574, %s36, 1
        %s576 = scalar_lea.vmem %s7, %s575
        %s577 = smul.u32 4, %s37
        %s578 = smul.u32 4, %s37
        %v582 = vld [vmem:[%s467] sm:$0xf]
        %v583 = vunpack.c.l.bf16 %v582
        %v584 = vld [vmem:[%s573] sm:$0x1]
        %v586 = vlaneseq
        %v587 = vshrl.u32 %v586, 7
        %v588 = vsub.s32 0, %v587
        %v589 = vrot.slane %v584, %v588
        %v591 = vmul.f32 %v583, %v589
        %v592 = vld [vmem:[%s576] sm:$0x1]
        %v594 = vlaneseq
        %v595 = vshrl.u32 %v594, 7
        %v596 = vsub.s32 0, %v595
        %v597 = vrot.slane %v592, %v596
        %v599 = vadd.f32 %v591, %v597
        %v600 = vxor.u32 %v599, 2147483648
        %v601 = vmul.f32 %v600, 1.442695
        %v602 = vpow.pop %v601
        %v603 = vadd.f32 %v602, 1.0
        %v604 = vrcp.pop %v603
        %v605 = vmul.f32 1.0, %v604
        %v606 = vmul.f32 %v599, %v605
        %v607 = vpack.c.bf16 %v606, %v606
        %vm608 = vcmask 519168
        %609 = vst.msk [vmem:[#allocation2] sm:$0xf] %vm608, %v607
        %v610 = vld [vmem:[%s557] sm:$0xf]
        %v611 = vld [vmem:[%s557 + $0x4] sm:$0xf]
        %v612 = vld [vmem:[%s557 + $0x8] sm:$0xf]
        %v613 = vld [vmem:[%s557 + $0xc] sm:$0xf]
        %v614 = vunpack.c.l.bf16 %v610
        %v615 = vunpack.c.l.bf16 %v611
        %v616 = vunpack.c.l.bf16 %v612
        %v617 = vunpack.c.l.bf16 %v613
        %v618 = vld [vmem:[%s573] sm:$0x1]
        %v620 = vlaneseq
        %v621 = vshrl.u32 %v620, 7
        %v622 = vsub.s32 0, %v621
        %v623 = vrot.slane %v618, %v622
        %v625 = vmul.f32 %v614, %v623
        %v626 = vmul.f32 %v615, %v623
        %v627 = vmul.f32 %v616, %v623
        %v628 = vmul.f32 %v617, %v623
        %v629 = vld [vmem:[%s576] sm:$0x1]
        %v631 = vlaneseq
        %v632 = vshrl.u32 %v631, 7
        %v633 = vsub.s32 0, %v632
        %v634 = vrot.slane %v629, %v633
        %v636 = vadd.f32 %v625, %v634
        %v637 = vadd.f32 %v626, %v634
        %v638 = vadd.f32 %v627, %v634
        %v639 = vadd.f32 %v628, %v634
        %v640 = vxor.u32 %v636, 2147483648
        %v641 = vxor.u32 %v637, 2147483648
        %v642 = vxor.u32 %v638, 2147483648
        %v643 = vxor.u32 %v639, 2147483648
        %v644 = vmul.f32 %v640, 1.442695
        %v645 = vpow.pop %v644
        %v646 = vmul.f32 %v641, 1.442695
        %v647 = vpow.pop %v646
        %v648 = vmul.f32 %v642, 1.442695
        %v649 = vpow.pop %v648
        %v650 = vmul.f32 %v643, 1.442695
        %v651 = vpow.pop %v650
        %v652 = vadd.f32 %v645, 1.0
        %v653 = vadd.f32 %v647, 1.0
        %v654 = vadd.f32 %v649, 1.0
        %v655 = vadd.f32 %v651, 1.0
        %v656 = vrcp.pop %v652
        %v657 = vmul.f32 1.0, %v656
        %v658 = vrcp.pop %v653
        %v659 = vmul.f32 1.0, %v658
        %v660 = vrcp.pop %v654
        %v661 = vmul.f32 1.0, %v660
        %v662 = vrcp.pop %v655
        %v663 = vmul.f32 1.0, %v662
        %v664 = vmul.f32 %v636, %v657
        %v665 = vmul.f32 %v637, %v659
        %v666 = vmul.f32 %v638, %v661
        %v667 = vmul.f32 %v639, %v663
        %v668 = vpack.c.bf16 %v665, %v664
        %v669 = vpack.c.bf16 %v667, %v666
        %vm672 = vcmask 1043456
        %v673 = vrot.slane %v668, 4
        %v674 = vrot.slane %v669, 4
        %v675 = vsel %vm672, %v673, %v674
        %vm679 = vcmask 523268
        %680 = vst.msk [vmem:[#allocation2] sm:$0xf0] %vm679, %v673
        %vm681 = vcmask 523264
        %682 = vst.msk [vmem:[#allocation2 + $0x8] sm:$0xff] %vm681, %v675
        %683 = vst.msk [vmem:[#allocation2 + $0x10] sm:$0xf] %vm608, %v674
        %v684 = vld [vmem:[%s476] sm:$0xf]
        %v685 = vunpack.c.l.bf16 %v684
        %v686 = vld [vmem:[%s573] sm:$0x1]
        %v688 = vlaneseq
        %v689 = vshrl.u32 %v688, 7
        %v690 = vsub.s32 0, %v689
        %v691 = vrot.slane %v686, %v690
        %v693 = vmul.f32 %v685, %v691
        %v694 = vld [vmem:[%s576] sm:$0x1]
        %v696 = vlaneseq
        %v697 = vshrl.u32 %v696, 7
        %v698 = vsub.s32 0, %v697
        %v699 = vrot.slane %v694, %v698
        %v701 = vadd.f32 %v693, %v699
        %v702 = vxor.u32 %v701, 2147483648
        %v703 = vmul.f32 %v702, 1.442695
        %v704 = vpow.pop %v703
        %v705 = vadd.f32 %v704, 1.0
        %v706 = vrcp.pop %v705
        %v707 = vmul.f32 1.0, %v706
        %v708 = vmul.f32 %v701, %v707
        %v709 = vpack.c.bf16 %v708, %v708
        %v711 = vrot.slane %v709, 4
        %713 = vst.msk [vmem:[#allocation2 + $0x10] sm:$0xf0] %vm679, %v711
        %v714 = vld [vmem:[%s5] sm:$0xff]
        %v715 = vld [vmem:[%s5 + $0x8] sm:$0xff]
        %v716 = vld [vmem:[%s5 + $0x10] sm:$0xff]
        %v717 = vld [vmem:[%s5 + $0x18] sm:$0xff]
        %s718 = smul.u32 %s37, 32
        %v719 = vlaneseq
        %v720 = vshrl.u32 %v719, 7
        %v721 = vadd.s32 %v720, 8
        %v722 = vadd.s32 %v720, 16
        %v723 = vadd.s32 %v720, 24
        %v724 = vstv %s718
        %v725 = vadd.s32 %v724, %v720
        %v726 = vadd.s32 %v724, %v721
        %v727 = vadd.s32 %v724, %v722
        %v728 = vadd.s32 %v724, %v723
        %vm729 = vcmp.ne.s32.totalorder %v714, 0
        %vm730 = vcmp.ne.s32.totalorder %v715, 0
        %vm731 = vcmp.ne.s32.totalorder %v716, 0
        %vm732 = vcmp.ne.s32.totalorder %v717, 0
        %vm733 = vcmp.ne.s32.totalorder %v714, 3
        %vm734 = vcmp.ne.s32.totalorder %v715, 3
        %vm735 = vcmp.ne.s32.totalorder %v716, 3
        %vm736 = vcmp.ne.s32.totalorder %v717, 3
        %vm737 = vcmp.ge.s32.totalorder %v725, 4
        %vm738 = vcmp.ge.s32.totalorder %v726, 4
        %vm739 = vcmp.ge.s32.totalorder %v727, 4
        %vm740 = vcmp.ge.s32.totalorder %v728, 4
        %vm741 = vcmp.lt.s32.totalorder %v725, 28
        %vm742 = vcmp.lt.s32.totalorder %v726, 28
        %vm743 = vcmp.lt.s32.totalorder %v727, 28
        %vm744 = vcmp.lt.s32.totalorder %v728, 28
        %v745 = vld [vmem:[%s4] sm:$0x1]
        %v747 = vlaneseq
        %v748 = vshrl.u32 %v747, 7
        %v749 = vsub.s32 0, %v748
        %v750 = vrot.slane %v745, %v749
        %752 = vst [vmem:[#allocation3] sm:$0xff] %v750
        %753 = vst [vmem:[#allocation3 + $0x8] sm:$0xff] %v750
        %754 = vst [vmem:[#allocation3 + $0x10] sm:$0xff] %v750
        %755 = vst [vmem:[#allocation3 + $0x18] sm:$0xff] %v750
        %v756 = vld [vmem:[#allocation3] sm:$0xff]
        %v757 = vld [vmem:[#allocation3 + $0x8] sm:$0xff]
        %v758 = vld [vmem:[#allocation3 + $0x10] sm:$0xff]
        %v759 = vld [vmem:[#allocation3 + $0x18] sm:$0xff]
        %v760 = vld [vmem:[#allocation2] sm:$0xfe]
        %v761 = vld [vmem:[#allocation2 + $0x8] sm:$0xff]
        %v762 = vld [vmem:[#allocation2 + $0x10] sm:$0x3]
        %vm763 = vmand %vm737, %vm729
        %vm764 = vmand %vm738, %vm730
        %vm765 = vmand %vm739, %vm731
        %vm766 = vmand %vm740, %vm732
        %v767 = vsel %vm763, 1, 0
        %v768 = vsel %vm764, 1, 0
        %v769 = vsel %vm765, 1, 0
        %v770 = vsel %vm766, 1, 0
        %771 = vset.pattern.permute.xlu0 0
        %772 = vperm.xlu0 %771, %v767
        %v773 = vpop.permute.xlu0 %772
        %774 = vset.pattern.permute.xlu0 0
        %775 = vperm.xlu0 %774, %v768
        %v776 = vpop.permute.xlu0 %775
        %777 = vset.pattern.permute.xlu0 0
        %778 = vperm.xlu0 %777, %v769
        %v779 = vpop.permute.xlu0 %778
        %780 = vset.pattern.permute.xlu0 0
        %781 = vperm.xlu0 %780, %v770
        %v782 = vpop.permute.xlu0 %781
        %vm783 = vcmp.eq.s32.totalorder %v773, 1
        %vm784 = vcmp.eq.s32.totalorder %v776, 1
        %vm785 = vcmp.eq.s32.totalorder %v779, 1
        %vm786 = vcmp.eq.s32.totalorder %v782, 1
        %vm787 = vmpackc.low %vm783, %vm783
        %vm788 = vmpackc.low %vm784, %vm784
        %vm789 = vmpackc.low %vm785, %vm785
        %vm790 = vmpackc.low %vm786, %vm786
        %v791 = vsel %vm787, 65537, 0
        %v792 = vsel %vm788, 65537, 0
        %v793 = vsel %vm789, 65537, 0
        %v794 = vsel %vm790, 65537, 0
        %v795 = vunpack.c.l.b16 %v791
        %v796 = vunpack.c.l.b16 %v792
        %v797 = vunpack.c.l.b16 %v793
        %v798 = vunpack.c.l.b16 %v794
        %v799 = vpack.c.b16 %v796, %v795
        %v800 = vpack.c.b16 %v798, %v797
        %vm801 = vsmask.f32 1280
        %v803 = vshrl.u32 %v799, 16
        %v805 = vrot.slane %v803, 6
        %v806 = vshll.u32 %v799, 16
        %v808 = vrot.slane %v806, 7
        %v809 = vor.u32 %v805, %v808
        %v811 = vshrl.u32 %v800, 16
        %v813 = vrot.slane %v811, 6
        %v814 = vshll.u32 %v800, 16
        %v816 = vrot.slane %v814, 7
        %v817 = vor.u32 %v813, %v816
        %v818 = vsel %vm801, %v809, %v817
        %vm819 = vcmp.ne.s16.totalorder %v809, 0
        %vm820 = vcmp.ne.s16.totalorder %v818, 0
        %vm821 = vcmp.ne.s16.totalorder %v817, 0
        %v822 = vsel %vm819, %v760, 0
        %v823 = vsel %vm820, %v761, 0
        %v824 = vsel %vm821, %v762, 0
        %v825 = vld [vmem:[#allocation9] sm:$0xf]
        %v826 = vld [vmem:[#allocation9 + $0x4] sm:$0xf]
        %v827 = vld [vmem:[#allocation9 + $0x8] sm:$0xf]
        %v828 = vld [vmem:[#allocation9 + $0xc] sm:$0xf]
        %v829 = vld [vmem:[#allocation9 + $0x10] sm:$0xf]
        %v830 = vld [vmem:[#allocation9 + $0x14] sm:$0xf]
        %v831 = vld [vmem:[#allocation9 + $0x18] sm:$0xf]
        %v832 = vld [vmem:[#allocation9 + $0x1c] sm:$0xf]
        %vm833 = vsmask.f32 6400
        %v835 = vshrl.u32 %v822, 16
        %v837 = vrot.slane %v835, 1
        %v838 = vshll.u32 %v822, 16
        %v840 = vrot.slane %v838, 2
        %v841 = vor.u32 %v837, %v840
        %v843 = vshrl.u32 %v823, 16
        %v845 = vrot.slane %v843, 1
        %v846 = vshll.u32 %v823, 16
        %v848 = vrot.slane %v846, 2
        %v849 = vor.u32 %v845, %v848
        %v850 = vsel %vm833, %v841, %v849
        %v852 = vshrl.u32 %v824, 16
        %v854 = vrot.slane %v852, 1
        %v855 = vshll.u32 %v824, 16
        %v857 = vrot.slane %v855, 2
        %v858 = vor.u32 %v854, %v857
        %v859 = vsel %vm833, %v849, %v858
        %v868 = vunpack.c.l.b16 %v825
        %v869 = vunpack.c.l.b16 %v826
        %v870 = vunpack.c.l.b16 %v827
        %v871 = vunpack.c.l.b16 %v828
        %v872 = vunpack.c.l.b16 %v829
        %v873 = vunpack.c.l.b16 %v830
        %v874 = vunpack.c.l.b16 %v831
        %v875 = vunpack.c.l.b16 %v832
        %v876 = vpack.c.b16 %v869, %v868
        %v877 = vpack.c.b16 %v871, %v870
        %v878 = vpack.c.b16 %v873, %v872
        %v879 = vpack.c.b16 %v875, %v874
        %v885 = vsel %vm681, %v850, 0
        %v888 = vsel %vm681, %v859, 0
        %890 = vmatprep.subr.bf16.mxu0 0
        %891 = vmatpush1.bf16.msra.mxu0 %v876
        %892 = vmatprep.subr.bf16.mxu0 0
        %893 = vmatpush1.bf16.msra.mxu0 %v877
        %894 = vmatprep.subr.bf16.mxu0 0
        %895 = vmatpush1.bf16.msra.mxu0 %v878
        %896 = vmatprep.subr.bf16.mxu0 0
        %897 = vmatpush1.bf16.msra.mxu0 %v879
        %898 = vmatprep.subr.bf16.mxu0 0
        %899 = vmatpush1.bf16.msra.mxu0 0
        %900 = vmatprep.subr.bf16.mxu0 0
        %901 = vmatpush1.bf16.msra.mxu0 0
        %902 = vmatprep.subr.bf16.mxu0 0
        %903 = vmatpush1.bf16.msra.mxu0 0
        %904 = vmatprep.subr.bf16.mxu0 0
        %905 = vmatpush1.bf16.msra.mxu0 0
        %906 = vmatprep.subr.bf16.mxu0 0
        %907 = vmatpush1.bf16.msra.mxu0 0
        %908 = vmatprep.subr.bf16.mxu0 0
        %909 = vmatpush1.bf16.msra.mxu0 0
        %910 = vmatprep.subr.bf16.mxu0 0
        %911 = vmatpush1.bf16.msra.mxu0 0
        %912 = vmatprep.subr.bf16.mxu0 0
        %913 = vmatpush1.bf16.msra.mxu0 0
        %914 = vmatprep.subr.bf16.mxu0 0
        %915 = vmatpush1.bf16.msra.mxu0 0
        %916 = vmatprep.subr.bf16.mxu0 0
        %917 = vmatpush1.bf16.msra.mxu0 0
        %918 = vmatprep.subr.bf16.mxu0 0
        %919 = vmatpush1.bf16.msra.mxu0 0
        %920 = vmatprep.subr.bf16.mxu0 0
        %921 = vmatpush1.bf16.msra.mxu0 0
        %922 = vmatprep.mubr.bf16.mxu0 0
        %923 = vmatmul.mubr.bf16.gmra.mrb[0].mxu0 %v885
        %v924 = vpop.f32.mrb[0].mxu0
        %v925 = vadd.f32 0.0, %v924
        %v926 = vpop.f32.mrb[0].mxu0
        %v927 = vpop.f32.mrb[0].mxu0
        %v928 = vadd.f32 0.0, %v927
        %v929 = vpop.f32.mrb[0].mxu0
        %930 = vmatprep.mubr.bf16.mxu0 0
        %931 = vmatmul.mubr.bf16.gmra.mrb[0].mxu0 %v888
        %v932 = vpop.f32.mrb[0].mxu0
        %v933 = vadd.f32 0.0, %v932
        %v934 = vpop.f32.mrb[0].mxu0
        %v935 = vpop.f32.mrb[0].mxu0
        %v936 = vadd.f32 0.0, %v935
        %v937 = vpop.f32.mrb[0].mxu0
        %938 = vdwg.mxu0
        %v939 = vadd.f32 %v756, %v925
        %v940 = vadd.f32 %v757, %v928
        %v941 = vadd.f32 %v758, %v933
        %v942 = vadd.f32 %v759, %v936
        %943 = vst [vmem:[#allocation3] sm:$0xff] %v939
        %944 = vst [vmem:[#allocation3 + $0x8] sm:$0xff] %v940
        %945 = vst [vmem:[#allocation3 + $0x10] sm:$0xff] %v941
        %946 = vst [vmem:[#allocation3 + $0x18] sm:$0xff] %v942
        %v947 = vld [vmem:[#allocation3] sm:$0xff]
        %v948 = vld [vmem:[#allocation3 + $0x8] sm:$0xff]
        %v949 = vld [vmem:[#allocation3 + $0x10] sm:$0xff]
        %v950 = vld [vmem:[#allocation3 + $0x18] sm:$0xff]
        %v951 = vld [vmem:[#allocation2] sm:$0xfc]
        %v952 = vld [vmem:[#allocation2 + $0x8] sm:$0xff]
        %v953 = vld [vmem:[#allocation2 + $0x10] sm:$0x3]
        %v954 = vsel %vm737, 1, 0
        %v955 = vsel %vm738, 1, 0
        %v956 = vsel %vm739, 1, 0
        %v957 = vsel %vm740, 1, 0
        %vm958 = vcmp.eq.s32.totalorder %v954, 1
        %vm959 = vcmp.eq.s32.totalorder %v955, 1
        %vm960 = vcmp.eq.s32.totalorder %v956, 1
        %vm961 = vcmp.eq.s32.totalorder %v957, 1
        %vm962 = vmpackc.low %vm958, %vm958
        %vm963 = vmpackc.low %vm959, %vm959
        %vm964 = vmpackc.low %vm960, %vm960
        %vm965 = vmpackc.low %vm961, %vm961
        %v966 = vsel %vm962, 65537, 0
        %v967 = vsel %vm963, 65537, 0
        %v968 = vsel %vm964, 65537, 0
        %v969 = vsel %vm965, 65537, 0
        %v970 = vunpack.c.l.b16 %v966
        %v971 = vunpack.c.l.b16 %v967
        %v972 = vunpack.c.l.b16 %v968
        %v973 = vunpack.c.l.b16 %v969
        %v974 = vpack.c.b16 %v971, %v970
        %v975 = vpack.c.b16 %v973, %v972
        %vm976 = vcmask 1041408
        %v977 = vrot.slane %v974, 6
        %v978 = vrot.slane %v975, 6
        %v979 = vsel %vm976, %v977, %v978
        %vm980 = vcmp.ne.s16.totalorder %v977, 0
        %vm981 = vcmp.ne.s16.totalorder %v979, 0
        %vm982 = vcmp.ne.s16.totalorder %v978, 0
        %v983 = vsel %vm980, %v951, 0
        %v984 = vsel %vm981, %v952, 0
        %v985 = vsel %vm982, %v953, 0
        %s986 = scalar_lea.vmem [#allocation9], 32
        %v987 = vld [vmem:[%s986] sm:$0xf]
        %v988 = vld [vmem:[%s986 + $0x4] sm:$0xf]
        %v989 = vld [vmem:[%s986 + $0x8] sm:$0xf]
        %v990 = vld [vmem:[%s986 + $0xc] sm:$0xf]
        %v991 = vld [vmem:[%s986 + $0x10] sm:$0xf]
        %v992 = vld [vmem:[%s986 + $0x14] sm:$0xf]
        %v993 = vld [vmem:[%s986 + $0x18] sm:$0xf]
        %v994 = vld [vmem:[%s986 + $0x1c] sm:$0xf]
        %vm998 = vcmask 1045504
        %v999 = vrot.slane %v983, 2
        %v1000 = vrot.slane %v984, 2
        %v1001 = vsel %vm998, %v999, %v1000
        %v1002 = vrot.slane %v985, 2
        %v1003 = vsel %vm998, %v1000, %v1002
        %v1012 = vunpack.c.l.b16 %v987
        %v1013 = vunpack.c.l.b16 %v988
        %v1014 = vunpack.c.l.b16 %v989
        %v1015 = vunpack.c.l.b16 %v990
        %v1016 = vunpack.c.l.b16 %v991
        %v1017 = vunpack.c.l.b16 %v992
        %v1018 = vunpack.c.l.b16 %v993
        %v1019 = vunpack.c.l.b16 %v994
        %v1020 = vpack.c.b16 %v1013, %v1012
        %v1021 = vpack.c.b16 %v1015, %v1014
        %v1022 = vpack.c.b16 %v1017, %v1016
        %v1023 = vpack.c.b16 %v1019, %v1018
        %v1029 = vsel %vm681, %v1001, 0
        %v1032 = vsel %vm681, %v1003, 0
        %1034 = vmatprep.subr.bf16.mxu0 0
        %1035 = vmatpush1.bf16.msra.mxu0 %v1020
        %1036 = vmatprep.subr.bf16.mxu0 0
        %1037 = vmatpush1.bf16.msra.mxu0 %v1021
        %1038 = vmatprep.subr.bf16.mxu0 0
        %1039 = vmatpush1.bf16.msra.mxu0 %v1022
        %1040 = vmatprep.subr.bf16.mxu0 0
        %1041 = vmatpush1.bf16.msra.mxu0 %v1023
        %1042 = vmatprep.subr.bf16.mxu0 0
        %1043 = vmatpush1.bf16.msra.mxu0 0
        %1044 = vmatprep.subr.bf16.mxu0 0
        %1045 = vmatpush1.bf16.msra.mxu0 0
        %1046 = vmatprep.subr.bf16.mxu0 0
        %1047 = vmatpush1.bf16.msra.mxu0 0
        %1048 = vmatprep.subr.bf16.mxu0 0
        %1049 = vmatpush1.bf16.msra.mxu0 0
        %1050 = vmatprep.subr.bf16.mxu0 0
        %1051 = vmatpush1.bf16.msra.mxu0 0
        %1052 = vmatprep.subr.bf16.mxu0 0
        %1053 = vmatpush1.bf16.msra.mxu0 0
        %1054 = vmatprep.subr.bf16.mxu0 0
        %1055 = vmatpush1.bf16.msra.mxu0 0
        %1056 = vmatprep.subr.bf16.mxu0 0
        %1057 = vmatpush1.bf16.msra.mxu0 0
        %1058 = vmatprep.subr.bf16.mxu0 0
        %1059 = vmatpush1.bf16.msra.mxu0 0
        %1060 = vmatprep.subr.bf16.mxu0 0
        %1061 = vmatpush1.bf16.msra.mxu0 0
        %1062 = vmatprep.subr.bf16.mxu0 0
        %1063 = vmatpush1.bf16.msra.mxu0 0
        %1064 = vmatprep.subr.bf16.mxu0 0
        %1065 = vmatpush1.bf16.msra.mxu0 0
        %1066 = vmatprep.mubr.bf16.mxu0 0
        %1067 = vmatmul.mubr.bf16.gmra.mrb[0].mxu0 %v1029
        %v1068 = vpop.f32.mrb[0].mxu0
        %v1069 = vadd.f32 0.0, %v1068
        %v1070 = vpop.f32.mrb[0].mxu0
        %v1071 = vpop.f32.mrb[0].mxu0
        %v1072 = vadd.f32 0.0, %v1071
        %v1073 = vpop.f32.mrb[0].mxu0
        %1074 = vmatprep.mubr.bf16.mxu0 0
        %1075 = vmatmul.mubr.bf16.gmra.mrb[0].mxu0 %v1032
        %v1076 = vpop.f32.mrb[0].mxu0
        %v1077 = vadd.f32 0.0, %v1076
        %v1078 = vpop.f32.mrb[0].mxu0
        %v1079 = vpop.f32.mrb[0].mxu0
        %v1080 = vadd.f32 0.0, %v1079
        %v1081 = vpop.f32.mrb[0].mxu0
        %1082 = vdwg.mxu0
        %v1083 = vadd.f32 %v947, %v1069
        %v1084 = vadd.f32 %v948, %v1072
        %v1085 = vadd.f32 %v949, %v1077
        %v1086 = vadd.f32 %v950, %v1080
        %1087 = vst [vmem:[#allocation3] sm:$0xff] %v1083
        %1088 = vst [vmem:[#allocation3 + $0x8] sm:$0xff] %v1084
        %1089 = vst [vmem:[#allocation3 + $0x10] sm:$0xff] %v1085
        %1090 = vst [vmem:[#allocation3 + $0x18] sm:$0xff] %v1086
        %v1091 = vld [vmem:[#allocation3] sm:$0xff]
        %v1092 = vld [vmem:[#allocation3 + $0x8] sm:$0xff]
        %v1093 = vld [vmem:[#allocation3 + $0x10] sm:$0xff]
        %v1094 = vld [vmem:[#allocation3 + $0x18] sm:$0xff]
        %v1095 = vld [vmem:[#allocation2] sm:$0xfc]
        %v1096 = vld [vmem:[#allocation2 + $0x8] sm:$0xff]
        %v1097 = vld [vmem:[#allocation2 + $0x10] sm:$0x7]
        %vm1098 = vmand %vm737, %vm733
        %vm1099 = vmand %vm738, %vm734
        %vm1100 = vmand %vm739, %vm735
        %vm1101 = vmand %vm740, %vm736
        %v1102 = vsel %vm1098, 1, 0
        %v1103 = vsel %vm1099, 1, 0
        %v1104 = vsel %vm1100, 1, 0
        %v1105 = vsel %vm1101, 1, 0
        %1106 = vset.pattern.permute.xlu0 0
        %1107 = vperm.xlu0 %1106, %v1102
        %v1108 = vpop.permute.xlu0 %1107
        %1109 = vset.pattern.permute.xlu0 0
        %1110 = vperm.xlu0 %1109, %v1103
        %v1111 = vpop.permute.xlu0 %1110
        %1112 = vset.pattern.permute.xlu0 0
        %1113 = vperm.xlu0 %1112, %v1104
        %v1114 = vpop.permute.xlu0 %1113
        %1115 = vset.pattern.permute.xlu0 0
        %1116 = vperm.xlu0 %1115, %v1105
        %v1117 = vpop.permute.xlu0 %1116
        %vm1118 = vcmp.eq.s32.totalorder %v1108, 1
        %vm1119 = vcmp.eq.s32.totalorder %v1111, 1
        %vm1120 = vcmp.eq.s32.totalorder %v1114, 1
        %vm1121 = vcmp.eq.s32.totalorder %v1117, 1
        %vm1122 = vmpackc.low %vm1118, %vm1118
        %vm1123 = vmpackc.low %vm1119, %vm1119
        %vm1124 = vmpackc.low %vm1120, %vm1120
        %vm1125 = vmpackc.low %vm1121, %vm1121
        %v1126 = vsel %vm1122, 65537, 0
        %v1127 = vsel %vm1123, 65537, 0
        %v1128 = vsel %vm1124, 65537, 0
        %v1129 = vsel %vm1125, 65537, 0
        %v1130 = vunpack.c.l.b16 %v1126
        %v1131 = vunpack.c.l.b16 %v1127
        %v1132 = vunpack.c.l.b16 %v1128
        %v1133 = vunpack.c.l.b16 %v1129
        %v1134 = vpack.c.b16 %v1131, %v1130
        %v1135 = vpack.c.b16 %v1133, %v1132
        %vm1136 = vsmask.f32 2304
        %v1138 = vshrl.u32 %v1134, 16
        %v1140 = vrot.slane %v1138, 5
        %v1141 = vshll.u32 %v1134, 16
        %v1143 = vrot.slane %v1141, 6
        %v1144 = vor.u32 %v1140, %v1143
        %v1146 = vshrl.u32 %v1135, 16
        %v1148 = vrot.slane %v1146, 5
        %v1149 = vshll.u32 %v1135, 16
        %v1151 = vrot.slane %v1149, 6
        %v1152 = vor.u32 %v1148, %v1151
        %v1153 = vsel %vm1136, %v1144, %v1152
        %vm1154 = vcmp.ne.s16.totalorder %v1144, 0
        %vm1155 = vcmp.ne.s16.totalorder %v1153, 0
        %vm1156 = vcmp.ne.s16.totalorder %v1152, 0
        %v1157 = vsel %vm1154, %v1095, 0
        %v1158 = vsel %vm1155, %v1096, 0
        %v1159 = vsel %vm1156, %v1097, 0
        %s1160 = scalar_lea.vmem [#allocation9], 64
        %v1161 = vld [vmem:[%s1160] sm:$0xf]
        %v1162 = vld [vmem:[%s1160 + $0x4] sm:$0xf]
        %v1163 = vld [vmem:[%s1160 + $0x8] sm:$0xf]
        %v1164 = vld [vmem:[%s1160 + $0xc] sm:$0xf]
        %v1165 = vld [vmem:[%s1160 + $0x10] sm:$0xf]
        %v1166 = vld [vmem:[%s1160 + $0x14] sm:$0xf]
        %v1167 = vld [vmem:[%s1160 + $0x18] sm:$0xf]
        %v1168 = vld [vmem:[%s1160 + $0x1c] sm:$0xf]
        %vm1169 = vsmask.f32 5376
        %v1171 = vshrl.u32 %v1157, 16
        %v1173 = vrot.slane %v1171, 2
        %v1174 = vshll.u32 %v1157, 16
        %v1176 = vrot.slane %v1174, 3
        %v1177 = vor.u32 %v1173, %v1176
        %v1179 = vshrl.u32 %v1158, 16
        %v1181 = vrot.slane %v1179, 2
        %v1182 = vshll.u32 %v1158, 16
        %v1184 = vrot.slane %v1182, 3
        %v1185 = vor.u32 %v1181, %v1184
        %v1186 = vsel %vm1169, %v1177, %v1185
        %v1188 = vshrl.u32 %v1159, 16
        %v1190 = vrot.slane %v1188, 2
        %v1191 = vshll.u32 %v1159, 16
        %v1193 = vrot.slane %v1191, 3
        %v1194 = vor.u32 %v1190, %v1193
        %v1195 = vsel %vm1169, %v1185, %v1194
        %v1204 = vunpack.c.l.b16 %v1161
        %v1205 = vunpack.c.l.b16 %v1162
        %v1206 = vunpack.c.l.b16 %v1163
        %v1207 = vunpack.c.l.b16 %v1164
        %v1208 = vunpack.c.l.b16 %v1165
        %v1209 = vunpack.c.l.b16 %v1166
        %v1210 = vunpack.c.l.b16 %v1167
        %v1211 = vunpack.c.l.b16 %v1168
        %v1212 = vpack.c.b16 %v1205, %v1204
        %v1213 = vpack.c.b16 %v1207, %v1206
        %v1214 = vpack.c.b16 %v1209, %v1208
        %v1215 = vpack.c.b16 %v1211, %v1210
        %v1221 = vsel %vm681, %v1186, 0
        %v1224 = vsel %vm681, %v1195, 0
        %1226 = vmatprep.subr.bf16.mxu0 0
        %1227 = vmatpush1.bf16.msra.mxu0 %v1212
        %1228 = vmatprep.subr.bf16.mxu0 0
        %1229 = vmatpush1.bf16.msra.mxu0 %v1213
        %1230 = vmatprep.subr.bf16.mxu0 0
        %1231 = vmatpush1.bf16.msra.mxu0 %v1214
        %1232 = vmatprep.subr.bf16.mxu0 0
        %1233 = vmatpush1.bf16.msra.mxu0 %v1215
        %1234 = vmatprep.subr.bf16.mxu0 0
        %1235 = vmatpush1.bf16.msra.mxu0 0
        %1236 = vmatprep.subr.bf16.mxu0 0
        %1237 = vmatpush1.bf16.msra.mxu0 0
        %1238 = vmatprep.subr.bf16.mxu0 0
        %1239 = vmatpush1.bf16.msra.mxu0 0
        %1240 = vmatprep.subr.bf16.mxu0 0
        %1241 = vmatpush1.bf16.msra.mxu0 0
        %1242 = vmatprep.subr.bf16.mxu0 0
        %1243 = vmatpush1.bf16.msra.mxu0 0
        %1244 = vmatprep.subr.bf16.mxu0 0
        %1245 = vmatpush1.bf16.msra.mxu0 0
        %1246 = vmatprep.subr.bf16.mxu0 0
        %1247 = vmatpush1.bf16.msra.mxu0 0
        %1248 = vmatprep.subr.bf16.mxu0 0
        %1249 = vmatpush1.bf16.msra.mxu0 0
        %1250 = vmatprep.subr.bf16.mxu0 0
        %1251 = vmatpush1.bf16.msra.mxu0 0
        %1252 = vmatprep.subr.bf16.mxu0 0
        %1253 = vmatpush1.bf16.msra.mxu0 0
        %1254 = vmatprep.subr.bf16.mxu0 0
        %1255 = vmatpush1.bf16.msra.mxu0 0
        %1256 = vmatprep.subr.bf16.mxu0 0
        %1257 = vmatpush1.bf16.msra.mxu0 0
        %1258 = vmatprep.mubr.bf16.mxu0 0
        %1259 = vmatmul.mubr.bf16.gmra.mrb[0].mxu0 %v1221
        %v1260 = vpop.f32.mrb[0].mxu0
        %v1261 = vadd.f32 0.0, %v1260
        %v1262 = vpop.f32.mrb[0].mxu0
        %v1263 = vpop.f32.mrb[0].mxu0
        %v1264 = vadd.f32 0.0, %v1263
        %v1265 = vpop.f32.mrb[0].mxu0
        %1266 = vmatprep.mubr.bf16.mxu0 0
        %1267 = vmatmul.mubr.bf16.gmra.mrb[0].mxu0 %v1224
        %v1268 = vpop.f32.mrb[0].mxu0
        %v1269 = vadd.f32 0.0, %v1268
        %v1270 = vpop.f32.mrb[0].mxu0
        %v1271 = vpop.f32.mrb[0].mxu0
        %v1272 = vadd.f32 0.0, %v1271
        %v1273 = vpop.f32.mrb[0].mxu0
        %1274 = vdwg.mxu0
        %v1275 = vadd.f32 %v1091, %v1261
        %v1276 = vadd.f32 %v1092, %v1264
        %v1277 = vadd.f32 %v1093, %v1269
        %v1278 = vadd.f32 %v1094, %v1272
        %1279 = vst [vmem:[#allocation3] sm:$0xff] %v1275
        %1280 = vst [vmem:[#allocation3 + $0x8] sm:$0xff] %v1276
        %1281 = vst [vmem:[#allocation3 + $0x10] sm:$0xff] %v1277
        %1282 = vst [vmem:[#allocation3 + $0x18] sm:$0xff] %v1278
        %v1283 = vld [vmem:[#allocation3] sm:$0xff]
        %v1284 = vld [vmem:[#allocation3 + $0x8] sm:$0xff]
        %v1285 = vld [vmem:[#allocation3 + $0x10] sm:$0xff]
        %v1286 = vld [vmem:[#allocation3 + $0x18] sm:$0xff]
        %v1287 = vld [vmem:[#allocation2] sm:$0xf8]
        %v1288 = vld [vmem:[#allocation2 + $0x8] sm:$0xff]
        %v1289 = vld [vmem:[#allocation2 + $0x10] sm:$0xf]
        %v1290 = vsel %vm729, 1, 0
        %v1291 = vsel %vm730, 1, 0
        %v1292 = vsel %vm731, 1, 0
        %v1293 = vsel %vm732, 1, 0
        %1294 = vset.pattern.permute.xlu0 0
        %1295 = vperm.xlu0 %1294, %v1290
        %v1296 = vpop.permute.xlu0 %1295
        %1297 = vset.pattern.permute.xlu0 0
        %1298 = vperm.xlu0 %1297, %v1291
        %v1299 = vpop.permute.xlu0 %1298
        %1300 = vset.pattern.permute.xlu0 0
        %1301 = vperm.xlu0 %1300, %v1292
        %v1302 = vpop.permute.xlu0 %1301
        %1303 = vset.pattern.permute.xlu0 0
        %1304 = vperm.xlu0 %1303, %v1293
        %v1305 = vpop.permute.xlu0 %1304
        %vm1306 = vcmp.eq.s32.totalorder %v1296, 1
        %vm1307 = vcmp.eq.s32.totalorder %v1299, 1
        %vm1308 = vcmp.eq.s32.totalorder %v1302, 1
        %vm1309 = vcmp.eq.s32.totalorder %v1305, 1
        %vm1310 = vmpackc.low %vm1306, %vm1306
        %vm1311 = vmpackc.low %vm1307, %vm1307
        %vm1312 = vmpackc.low %vm1308, %vm1308
        %vm1313 = vmpackc.low %vm1309, %vm1309
        %v1314 = vsel %vm1310, 65537, 0
        %v1315 = vsel %vm1311, 65537, 0
        %v1316 = vsel %vm1312, 65537, 0
        %v1317 = vsel %vm1313, 65537, 0
        %v1318 = vunpack.c.l.b16 %v1314
        %v1319 = vunpack.c.l.b16 %v1315
        %v1320 = vunpack.c.l.b16 %v1316
        %v1321 = vunpack.c.l.b16 %v1317
        %v1322 = vpack.c.b16 %v1319, %v1318
        %v1323 = vpack.c.b16 %v1321, %v1320
        %vm1324 = vsmask.f32 3328
        %v1326 = vshrl.u32 %v1322, 16
        %v1328 = vrot.slane %v1326, 4
        %v1329 = vshll.u32 %v1322, 16
        %v1331 = vrot.slane %v1329, 5
        %v1332 = vor.u32 %v1328, %v1331
        %v1334 = vshrl.u32 %v1323, 16
        %v1336 = vrot.slane %v1334, 4
        %v1337 = vshll.u32 %v1323, 16
        %v1339 = vrot.slane %v1337, 5
        %v1340 = vor.u32 %v1336, %v1339
        %v1341 = vsel %vm1324, %v1332, %v1340
        %vm1342 = vcmp.ne.s16.totalorder %v1332, 0
        %vm1343 = vcmp.ne.s16.totalorder %v1341, 0
        %vm1344 = vcmp.ne.s16.totalorder %v1340, 0
        %v1345 = vsel %vm1342, %v1287, 0
        %v1346 = vsel %vm1343, %v1288, 0
        %v1347 = vsel %vm1344, %v1289, 0
        %s1348 = scalar_lea.vmem [#allocation9], 96
        %v1349 = vld [vmem:[%s1348] sm:$0xf]
        %v1350 = vld [vmem:[%s1348 + $0x4] sm:$0xf]
        %v1351 = vld [vmem:[%s1348 + $0x8] sm:$0xf]
        %v1352 = vld [vmem:[%s1348 + $0xc] sm:$0xf]
        %v1353 = vld [vmem:[%s1348 + $0x10] sm:$0xf]
        %v1354 = vld [vmem:[%s1348 + $0x14] sm:$0xf]
        %v1355 = vld [vmem:[%s1348 + $0x18] sm:$0xf]
        %v1356 = vld [vmem:[%s1348 + $0x1c] sm:$0xf]
        %vm1357 = vsmask.f32 4352
        %v1359 = vshrl.u32 %v1345, 16
        %v1361 = vrot.slane %v1359, 3
        %v1362 = vshll.u32 %v1345, 16
        %v1364 = vrot.slane %v1362, 4
        %v1365 = vor.u32 %v1361, %v1364
        %v1367 = vshrl.u32 %v1346, 16
        %v1369 = vrot.slane %v1367, 3
        %v1370 = vshll.u32 %v1346, 16
        %v1372 = vrot.slane %v1370, 4
        %v1373 = vor.u32 %v1369, %v1372
        %v1374 = vsel %vm1357, %v1365, %v1373
        %v1376 = vshrl.u32 %v1347, 16
        %v1378 = vrot.slane %v1376, 3
        %v1379 = vshll.u32 %v1347, 16
        %v1381 = vrot.slane %v1379, 4
        %v1382 = vor.u32 %v1378, %v1381
        %v1383 = vsel %vm1357, %v1373, %v1382
        %v1392 = vunpack.c.l.b16 %v1349
        %v1393 = vunpack.c.l.b16 %v1350
        %v1394 = vunpack.c.l.b16 %v1351
        %v1395 = vunpack.c.l.b16 %v1352
        %v1396 = vunpack.c.l.b16 %v1353
        %v1397 = vunpack.c.l.b16 %v1354
        %v1398 = vunpack.c.l.b16 %v1355
        %v1399 = vunpack.c.l.b16 %v1356
        %v1400 = vpack.c.b16 %v1393, %v1392
        %v1401 = vpack.c.b16 %v1395, %v1394
        %v1402 = vpack.c.b16 %v1397, %v1396
        %v1403 = vpack.c.b16 %v1399, %v1398
        %v1409 = vsel %vm681, %v1374, 0
        %v1412 = vsel %vm681, %v1383, 0
        %1414 = vmatprep.subr.bf16.mxu0 0
        %1415 = vmatpush1.bf16.msra.mxu0 %v1400
        %1416 = vmatprep.subr.bf16.mxu0 0
        %1417 = vmatpush1.bf16.msra.mxu0 %v1401
        %1418 = vmatprep.subr.bf16.mxu0 0
        %1419 = vmatpush1.bf16.msra.mxu0 %v1402
        %1420 = vmatprep.subr.bf16.mxu0 0
        %1421 = vmatpush1.bf16.msra.mxu0 %v1403
        %1422 = vmatprep.subr.bf16.mxu0 0
        %1423 = vmatpush1.bf16.msra.mxu0 0
        %1424 = vmatprep.subr.bf16.mxu0 0
        %1425 = vmatpush1.bf16.msra.mxu0 0
        %1426 = vmatprep.subr.bf16.mxu0 0
        %1427 = vmatpush1.bf16.msra.mxu0 0
        %1428 = vmatprep.subr.bf16.mxu0 0
        %1429 = vmatpush1.bf16.msra.mxu0 0
        %1430 = vmatprep.subr.bf16.mxu0 0
        %1431 = vmatpush1.bf16.msra.mxu0 0
        %1432 = vmatprep.subr.bf16.mxu0 0
        %1433 = vmatpush1.bf16.msra.mxu0 0
        %1434 = vmatprep.subr.bf16.mxu0 0
        %1435 = vmatpush1.bf16.msra.mxu0 0
        %1436 = vmatprep.subr.bf16.mxu0 0
        %1437 = vmatpush1.bf16.msra.mxu0 0
        %1438 = vmatprep.subr.bf16.mxu0 0
        %1439 = vmatpush1.bf16.msra.mxu0 0
        %1440 = vmatprep.subr.bf16.mxu0 0
        %1441 = vmatpush1.bf16.msra.mxu0 0
        %1442 = vmatprep.subr.bf16.mxu0 0
        %1443 = vmatpush1.bf16.msra.mxu0 0
        %1444 = vmatprep.subr.bf16.mxu0 0
        %1445 = vmatpush1.bf16.msra.mxu0 0
        %1446 = vmatprep.mubr.bf16.mxu0 0
        %1447 = vmatmul.mubr.bf16.gmra.mrb[0].mxu0 %v1409
        %v1448 = vpop.f32.mrb[0].mxu0
        %v1449 = vadd.f32 0.0, %v1448
        %v1450 = vpop.f32.mrb[0].mxu0
        %v1451 = vpop.f32.mrb[0].mxu0
        %v1452 = vadd.f32 0.0, %v1451
        %v1453 = vpop.f32.mrb[0].mxu0
        %1454 = vmatprep.mubr.bf16.mxu0 0
        %1455 = vmatmul.mubr.bf16.gmra.mrb[0].mxu0 %v1412
        %v1456 = vpop.f32.mrb[0].mxu0
        %v1457 = vadd.f32 0.0, %v1456
        %v1458 = vpop.f32.mrb[0].mxu0
        %v1459 = vpop.f32.mrb[0].mxu0
        %v1460 = vadd.f32 0.0, %v1459
        %v1461 = vpop.f32.mrb[0].mxu0
        %1462 = vdwg.mxu0
        %v1463 = vadd.f32 %v1283, %v1449
        %v1464 = vadd.f32 %v1284, %v1452
        %v1465 = vadd.f32 %v1285, %v1457
        %v1466 = vadd.f32 %v1286, %v1460
        %1467 = vst [vmem:[#allocation3] sm:$0xff] %v1463
        %1468 = vst [vmem:[#allocation3 + $0x8] sm:$0xff] %v1464
        %1469 = vst [vmem:[#allocation3 + $0x10] sm:$0xff] %v1465
        %1470 = vst [vmem:[#allocation3 + $0x18] sm:$0xff] %v1466
        %v1471 = vld [vmem:[#allocation3] sm:$0xff]
        %v1472 = vld [vmem:[#allocation3 + $0x8] sm:$0xff]
        %v1473 = vld [vmem:[#allocation3 + $0x10] sm:$0xff]
        %v1474 = vld [vmem:[#allocation3 + $0x18] sm:$0xff]
        %v1475 = vld [vmem:[#allocation2] sm:$0xf0]
        %v1476 = vld [vmem:[#allocation2 + $0x8] sm:$0xff]
        %v1477 = vld [vmem:[#allocation2 + $0x10] sm:$0xf]
        %s1478 = scalar_lea.vmem [#allocation9], 128
        %v1479 = vld [vmem:[%s1478] sm:$0xf]
        %v1480 = vld [vmem:[%s1478 + $0x4] sm:$0xf]
        %v1481 = vld [vmem:[%s1478 + $0x8] sm:$0xf]
        %v1482 = vld [vmem:[%s1478 + $0xc] sm:$0xf]
        %v1483 = vld [vmem:[%s1478 + $0x10] sm:$0xf]
        %v1484 = vld [vmem:[%s1478 + $0x14] sm:$0xf]
        %v1485 = vld [vmem:[%s1478 + $0x18] sm:$0xf]
        %v1486 = vld [vmem:[%s1478 + $0x1c] sm:$0xf]
        %v1490 = vrot.slane %v1475, 4
        %v1491 = vrot.slane %v1476, 4
        %v1492 = vsel %vm672, %v1490, %v1491
        %v1493 = vrot.slane %v1477, 4
        %v1494 = vsel %vm672, %v1491, %v1493
        %v1503 = vunpack.c.l.b16 %v1479
        %v1504 = vunpack.c.l.b16 %v1480
        %v1505 = vunpack.c.l.b16 %v1481
        %v1506 = vunpack.c.l.b16 %v1482
        %v1507 = vunpack.c.l.b16 %v1483
        %v1508 = vunpack.c.l.b16 %v1484
        %v1509 = vunpack.c.l.b16 %v1485
        %v1510 = vunpack.c.l.b16 %v1486
        %v1511 = vpack.c.b16 %v1504, %v1503
        %v1512 = vpack.c.b16 %v1506, %v1505
        %v1513 = vpack.c.b16 %v1508, %v1507
        %v1514 = vpack.c.b16 %v1510, %v1509
        %v1520 = vsel %vm681, %v1492, 0
        %v1523 = vsel %vm681, %v1494, 0
        %1525 = vmatprep.subr.bf16.mxu0 0
        %1526 = vmatpush1.bf16.msra.mxu0 %v1511
        %1527 = vmatprep.subr.bf16.mxu0 0
        %1528 = vmatpush1.bf16.msra.mxu0 %v1512
        %1529 = vmatprep.subr.bf16.mxu0 0
        %1530 = vmatpush1.bf16.msra.mxu0 %v1513
        %1531 = vmatprep.subr.bf16.mxu0 0
        %1532 = vmatpush1.bf16.msra.mxu0 %v1514
        %1533 = vmatprep.subr.bf16.mxu0 0
        %1534 = vmatpush1.bf16.msra.mxu0 0
        %1535 = vmatprep.subr.bf16.mxu0 0
        %1536 = vmatpush1.bf16.msra.mxu0 0
        %1537 = vmatprep.subr.bf16.mxu0 0
        %1538 = vmatpush1.bf16.msra.mxu0 0
        %1539 = vmatprep.subr.bf16.mxu0 0
        %1540 = vmatpush1.bf16.msra.mxu0 0
        %1541 = vmatprep.subr.bf16.mxu0 0
        %1542 = vmatpush1.bf16.msra.mxu0 0
        %1543 = vmatprep.subr.bf16.mxu0 0
        %1544 = vmatpush1.bf16.msra.mxu0 0
        %1545 = vmatprep.subr.bf16.mxu0 0
        %1546 = vmatpush1.bf16.msra.mxu0 0
        %1547 = vmatprep.subr.bf16.mxu0 0
        %1548 = vmatpush1.bf16.msra.mxu0 0
        %1549 = vmatprep.subr.bf16.mxu0 0
        %1550 = vmatpush1.bf16.msra.mxu0 0
        %1551 = vmatprep.subr.bf16.mxu0 0
        %1552 = vmatpush1.bf16.msra.mxu0 0
        %1553 = vmatprep.subr.bf16.mxu0 0
        %1554 = vmatpush1.bf16.msra.mxu0 0
        %1555 = vmatprep.subr.bf16.mxu0 0
        %1556 = vmatpush1.bf16.msra.mxu0 0
        %1557 = vmatprep.mubr.bf16.mxu0 0
        %1558 = vmatmul.mubr.bf16.gmra.mrb[0].mxu0 %v1520
        %v1559 = vpop.f32.mrb[0].mxu0
        %v1560 = vadd.f32 0.0, %v1559
        %v1561 = vpop.f32.mrb[0].mxu0
        %v1562 = vpop.f32.mrb[0].mxu0
        %v1563 = vadd.f32 0.0, %v1562
        %v1564 = vpop.f32.mrb[0].mxu0
        %1565 = vmatprep.mubr.bf16.mxu0 0
        %1566 = vmatmul.mubr.bf16.gmra.mrb[0].mxu0 %v1523
        %v1567 = vpop.f32.mrb[0].mxu0
        %v1568 = vadd.f32 0.0, %v1567
        %v1569 = vpop.f32.mrb[0].mxu0
        %v1570 = vpop.f32.mrb[0].mxu0
        %v1571 = vadd.f32 0.0, %v1570
        %v1572 = vpop.f32.mrb[0].mxu0
        %1573 = vdwg.mxu0
        %v1574 = vadd.f32 %v1471, %v1560
        %v1575 = vadd.f32 %v1472, %v1563
        %v1576 = vadd.f32 %v1473, %v1568
        %v1577 = vadd.f32 %v1474, %v1571
        %1578 = vst [vmem:[#allocation3] sm:$0xff] %v1574
        %1579 = vst [vmem:[#allocation3 + $0x8] sm:$0xff] %v1575
        %1580 = vst [vmem:[#allocation3 + $0x10] sm:$0xff] %v1576
        %1581 = vst [vmem:[#allocation3 + $0x18] sm:$0xff] %v1577
        %v1582 = vld [vmem:[#allocation3] sm:$0xff]
        %v1583 = vld [vmem:[#allocation3 + $0x8] sm:$0xff]
        %v1584 = vld [vmem:[#allocation3 + $0x10] sm:$0xff]
        %v1585 = vld [vmem:[#allocation3 + $0x18] sm:$0xff]
        %v1586 = vld [vmem:[#allocation2] sm:$0xf0]
        %v1587 = vld [vmem:[#allocation2 + $0x8] sm:$0xff]
        %v1588 = vld [vmem:[#allocation2 + $0x10] sm:$0x1f]
        %v1589 = vsel %vm733, 1, 0
        %v1590 = vsel %vm734, 1, 0
        %v1591 = vsel %vm735, 1, 0
        %v1592 = vsel %vm736, 1, 0
        %1593 = vset.pattern.permute.xlu0 0
        %1594 = vperm.xlu0 %1593, %v1589
        %v1595 = vpop.permute.xlu0 %1594
        %1596 = vset.pattern.permute.xlu0 0
        %1597 = vperm.xlu0 %1596, %v1590
        %v1598 = vpop.permute.xlu0 %1597
        %1599 = vset.pattern.permute.xlu0 0
        %1600 = vperm.xlu0 %1599, %v1591
        %v1601 = vpop.permute.xlu0 %1600
        %1602 = vset.pattern.permute.xlu0 0
        %1603 = vperm.xlu0 %1602, %v1592
        %v1604 = vpop.permute.xlu0 %1603
        %vm1605 = vcmp.eq.s32.totalorder %v1595, 1
        %vm1606 = vcmp.eq.s32.totalorder %v1598, 1
        %vm1607 = vcmp.eq.s32.totalorder %v1601, 1
        %vm1608 = vcmp.eq.s32.totalorder %v1604, 1
        %vm1609 = vmpackc.low %vm1605, %vm1605
        %vm1610 = vmpackc.low %vm1606, %vm1606
        %vm1611 = vmpackc.low %vm1607, %vm1607
        %vm1612 = vmpackc.low %vm1608, %vm1608
        %v1613 = vsel %vm1609, 65537, 0
        %v1614 = vsel %vm1610, 65537, 0
        %v1615 = vsel %vm1611, 65537, 0
        %v1616 = vsel %vm1612, 65537, 0
        %v1617 = vunpack.c.l.b16 %v1613
        %v1618 = vunpack.c.l.b16 %v1614
        %v1619 = vunpack.c.l.b16 %v1615
        %v1620 = vunpack.c.l.b16 %v1616
        %v1621 = vpack.c.b16 %v1618, %v1617
        %v1622 = vpack.c.b16 %v1620, %v1619
        %v1624 = vshrl.u32 %v1621, 16
        %v1626 = vrot.slane %v1624, 3
        %v1627 = vshll.u32 %v1621, 16
        %v1629 = vrot.slane %v1627, 4
        %v1630 = vor.u32 %v1626, %v1629
        %v1632 = vshrl.u32 %v1622, 16
        %v1634 = vrot.slane %v1632, 3
        %v1635 = vshll.u32 %v1622, 16
        %v1637 = vrot.slane %v1635, 4
        %v1638 = vor.u32 %v1634, %v1637
        %v1639 = vsel %vm1357, %v1630, %v1638
        %vm1640 = vcmp.ne.s16.totalorder %v1630, 0
        %vm1641 = vcmp.ne.s16.totalorder %v1639, 0
        %vm1642 = vcmp.ne.s16.totalorder %v1638, 0
        %v1643 = vsel %vm1640, %v1586, 0
        %v1644 = vsel %vm1641, %v1587, 0
        %v1645 = vsel %vm1642, %v1588, 0
        %s1646 = scalar_lea.vmem [#allocation9], 160
        %v1647 = vld [vmem:[%s1646] sm:$0xf]
        %v1648 = vld [vmem:[%s1646 + $0x4] sm:$0xf]
        %v1649 = vld [vmem:[%s1646 + $0x8] sm:$0xf]
        %v1650 = vld [vmem:[%s1646 + $0xc] sm:$0xf]
        %v1651 = vld [vmem:[%s1646 + $0x10] sm:$0xf]
        %v1652 = vld [vmem:[%s1646 + $0x14] sm:$0xf]
        %v1653 = vld [vmem:[%s1646 + $0x18] sm:$0xf]
        %v1654 = vld [vmem:[%s1646 + $0x1c] sm:$0xf]
        %v1656 = vshrl.u32 %v1643, 16
        %v1658 = vrot.slane %v1656, 4
        %v1659 = vshll.u32 %v1643, 16
        %v1661 = vrot.slane %v1659, 5
        %v1662 = vor.u32 %v1658, %v1661
        %v1664 = vshrl.u32 %v1644, 16
        %v1666 = vrot.slane %v1664, 4
        %v1667 = vshll.u32 %v1644, 16
        %v1669 = vrot.slane %v1667, 5
        %v1670 = vor.u32 %v1666, %v1669
        %v1671 = vsel %vm1324, %v1662, %v1670
        %v1673 = vshrl.u32 %v1645, 16
        %v1675 = vrot.slane %v1673, 4
        %v1676 = vshll.u32 %v1645, 16
        %v1678 = vrot.slane %v1676, 5
        %v1679 = vor.u32 %v1675, %v1678
        %v1680 = vsel %vm1324, %v1670, %v1679
        %v1689 = vunpack.c.l.b16 %v1647
        %v1690 = vunpack.c.l.b16 %v1648
        %v1691 = vunpack.c.l.b16 %v1649
        %v1692 = vunpack.c.l.b16 %v1650
        %v1693 = vunpack.c.l.b16 %v1651
        %v1694 = vunpack.c.l.b16 %v1652
        %v1695 = vunpack.c.l.b16 %v1653
        %v1696 = vunpack.c.l.b16 %v1654
        %v1697 = vpack.c.b16 %v1690, %v1689
        %v1698 = vpack.c.b16 %v1692, %v1691
        %v1699 = vpack.c.b16 %v1694, %v1693
        %v1700 = vpack.c.b16 %v1696, %v1695
        %v1706 = vsel %vm681, %v1671, 0
        %v1709 = vsel %vm681, %v1680, 0
        %1711 = vmatprep.subr.bf16.mxu0 0
        %1712 = vmatpush1.bf16.msra.mxu0 %v1697
        %1713 = vmatprep.subr.bf16.mxu0 0
        %1714 = vmatpush1.bf16.msra.mxu0 %v1698
        %1715 = vmatprep.subr.bf16.mxu0 0
        %1716 = vmatpush1.bf16.msra.mxu0 %v1699
        %1717 = vmatprep.subr.bf16.mxu0 0
        %1718 = vmatpush1.bf16.msra.mxu0 %v1700
        %1719 = vmatprep.subr.bf16.mxu0 0
        %1720 = vmatpush1.bf16.msra.mxu0 0
        %1721 = vmatprep.subr.bf16.mxu0 0
        %1722 = vmatpush1.bf16.msra.mxu0 0
        %1723 = vmatprep.subr.bf16.mxu0 0
        %1724 = vmatpush1.bf16.msra.mxu0 0
        %1725 = vmatprep.subr.bf16.mxu0 0
        %1726 = vmatpush1.bf16.msra.mxu0 0
        %1727 = vmatprep.subr.bf16.mxu0 0
        %1728 = vmatpush1.bf16.msra.mxu0 0
        %1729 = vmatprep.subr.bf16.mxu0 0
        %1730 = vmatpush1.bf16.msra.mxu0 0
        %1731 = vmatprep.subr.bf16.mxu0 0
        %1732 = vmatpush1.bf16.msra.mxu0 0
        %1733 = vmatprep.subr.bf16.mxu0 0
        %1734 = vmatpush1.bf16.msra.mxu0 0
        %1735 = vmatprep.subr.bf16.mxu0 0
        %1736 = vmatpush1.bf16.msra.mxu0 0
        %1737 = vmatprep.subr.bf16.mxu0 0
        %1738 = vmatpush1.bf16.msra.mxu0 0
        %1739 = vmatprep.subr.bf16.mxu0 0
        %1740 = vmatpush1.bf16.msra.mxu0 0
        %1741 = vmatprep.subr.bf16.mxu0 0
        %1742 = vmatpush1.bf16.msra.mxu0 0
        %1743 = vmatprep.mubr.bf16.mxu0 0
        %1744 = vmatmul.mubr.bf16.gmra.mrb[0].mxu0 %v1706
        %v1745 = vpop.f32.mrb[0].mxu0
        %v1746 = vadd.f32 0.0, %v1745
        %v1747 = vpop.f32.mrb[0].mxu0
        %v1748 = vpop.f32.mrb[0].mxu0
        %v1749 = vadd.f32 0.0, %v1748
        %v1750 = vpop.f32.mrb[0].mxu0
        %1751 = vmatprep.mubr.bf16.mxu0 0
        %1752 = vmatmul.mubr.bf16.gmra.mrb[0].mxu0 %v1709
        %v1753 = vpop.f32.mrb[0].mxu0
        %v1754 = vadd.f32 0.0, %v1753
        %v1755 = vpop.f32.mrb[0].mxu0
        %v1756 = vpop.f32.mrb[0].mxu0
        %v1757 = vadd.f32 0.0, %v1756
        %v1758 = vpop.f32.mrb[0].mxu0
        %1759 = vdwg.mxu0
        %v1760 = vadd.f32 %v1582, %v1746
        %v1761 = vadd.f32 %v1583, %v1749
        %v1762 = vadd.f32 %v1584, %v1754
        %v1763 = vadd.f32 %v1585, %v1757
        %1764 = vst [vmem:[#allocation3] sm:$0xff] %v1760
        %1765 = vst [vmem:[#allocation3 + $0x8] sm:$0xff] %v1761
        %1766 = vst [vmem:[#allocation3 + $0x10] sm:$0xff] %v1762
        %1767 = vst [vmem:[#allocation3 + $0x18] sm:$0xff] %v1763
        %v1768 = vld [vmem:[#allocation3] sm:$0xff]
        %v1769 = vld [vmem:[#allocation3 + $0x8] sm:$0xff]
        %v1770 = vld [vmem:[#allocation3 + $0x10] sm:$0xff]
        %v1771 = vld [vmem:[#allocation3 + $0x18] sm:$0xff]
        %v1772 = vld [vmem:[#allocation2] sm:$0xe0]
        %v1773 = vld [vmem:[#allocation2 + $0x8] sm:$0xff]
        %v1774 = vld [vmem:[#allocation2 + $0x10] sm:$0x3f]
        %vm1775 = vmand %vm741, %vm729
        %vm1776 = vmand %vm742, %vm730
        %vm1777 = vmand %vm743, %vm731
        %vm1778 = vmand %vm744, %vm732
        %v1779 = vsel %vm1775, 1, 0
        %v1780 = vsel %vm1776, 1, 0
        %v1781 = vsel %vm1777, 1, 0
        %v1782 = vsel %vm1778, 1, 0
        %1783 = vset.pattern.permute.xlu0 0
        %1784 = vperm.xlu0 %1783, %v1779
        %v1785 = vpop.permute.xlu0 %1784
        %1786 = vset.pattern.permute.xlu0 0
        %1787 = vperm.xlu0 %1786, %v1780
        %v1788 = vpop.permute.xlu0 %1787
        %1789 = vset.pattern.permute.xlu0 0
        %1790 = vperm.xlu0 %1789, %v1781
        %v1791 = vpop.permute.xlu0 %1790
        %1792 = vset.pattern.permute.xlu0 0
        %1793 = vperm.xlu0 %1792, %v1782
        %v1794 = vpop.permute.xlu0 %1793
        %vm1795 = vcmp.eq.s32.totalorder %v1785, 1
        %vm1796 = vcmp.eq.s32.totalorder %v1788, 1
        %vm1797 = vcmp.eq.s32.totalorder %v1791, 1
        %vm1798 = vcmp.eq.s32.totalorder %v1794, 1
        %vm1799 = vmpackc.low %vm1795, %vm1795
        %vm1800 = vmpackc.low %vm1796, %vm1796
        %vm1801 = vmpackc.low %vm1797, %vm1797
        %vm1802 = vmpackc.low %vm1798, %vm1798
        %v1803 = vsel %vm1799, 65537, 0
        %v1804 = vsel %vm1800, 65537, 0
        %v1805 = vsel %vm1801, 65537, 0
        %v1806 = vsel %vm1802, 65537, 0
        %v1807 = vunpack.c.l.b16 %v1803
        %v1808 = vunpack.c.l.b16 %v1804
        %v1809 = vunpack.c.l.b16 %v1805
        %v1810 = vunpack.c.l.b16 %v1806
        %v1811 = vpack.c.b16 %v1808, %v1807
        %v1812 = vpack.c.b16 %v1810, %v1809
        %v1814 = vshrl.u32 %v1811, 16
        %v1816 = vrot.slane %v1814, 2
        %v1817 = vshll.u32 %v1811, 16
        %v1819 = vrot.slane %v1817, 3
        %v1820 = vor.u32 %v1816, %v1819
        %v1822 = vshrl.u32 %v1812, 16
        %v1824 = vrot.slane %v1822, 2
        %v1825 = vshll.u32 %v1812, 16
        %v1827 = vrot.slane %v1825, 3
        %v1828 = vor.u32 %v1824, %v1827
        %v1829 = vsel %vm1169, %v1820, %v1828
        %vm1830 = vcmp.ne.s16.totalorder %v1820, 0
        %vm1831 = vcmp.ne.s16.totalorder %v1829, 0
        %vm1832 = vcmp.ne.s16.totalorder %v1828, 0
        %v1833 = vsel %vm1830, %v1772, 0
        %v1834 = vsel %vm1831, %v1773, 0
        %v1835 = vsel %vm1832, %v1774, 0
        %s1836 = scalar_lea.vmem [#allocation9], 192
        %v1837 = vld [vmem:[%s1836] sm:$0xf]
        %v1838 = vld [vmem:[%s1836 + $0x4] sm:$0xf]
        %v1839 = vld [vmem:[%s1836 + $0x8] sm:$0xf]
        %v1840 = vld [vmem:[%s1836 + $0xc] sm:$0xf]
        %v1841 = vld [vmem:[%s1836 + $0x10] sm:$0xf]
        %v1842 = vld [vmem:[%s1836 + $0x14] sm:$0xf]
        %v1843 = vld [vmem:[%s1836 + $0x18] sm:$0xf]
        %v1844 = vld [vmem:[%s1836 + $0x1c] sm:$0xf]
        %v1846 = vshrl.u32 %v1833, 16
        %v1848 = vrot.slane %v1846, 5
        %v1849 = vshll.u32 %v1833, 16
        %v1851 = vrot.slane %v1849, 6
        %v1852 = vor.u32 %v1848, %v1851
        %v1854 = vshrl.u32 %v1834, 16
        %v1856 = vrot.slane %v1854, 5
        %v1857 = vshll.u32 %v1834, 16
        %v1859 = vrot.slane %v1857, 6
        %v1860 = vor.u32 %v1856, %v1859
        %v1861 = vsel %vm1136, %v1852, %v1860
        %v1863 = vshrl.u32 %v1835, 16
        %v1865 = vrot.slane %v1863, 5
        %v1866 = vshll.u32 %v1835, 16
        %v1868 = vrot.slane %v1866, 6
        %v1869 = vor.u32 %v1865, %v1868
        %v1870 = vsel %vm1136, %v1860, %v1869
        %v1879 = vunpack.c.l.b16 %v1837
        %v1880 = vunpack.c.l.b16 %v1838
        %v1881 = vunpack.c.l.b16 %v1839
        %v1882 = vunpack.c.l.b16 %v1840
        %v1883 = vunpack.c.l.b16 %v1841
        %v1884 = vunpack.c.l.b16 %v1842
        %v1885 = vunpack.c.l.b16 %v1843
        %v1886 = vunpack.c.l.b16 %v1844
        %v1887 = vpack.c.b16 %v1880, %v1879
        %v1888 = vpack.c.b16 %v1882, %v1881
        %v1889 = vpack.c.b16 %v1884, %v1883
        %v1890 = vpack.c.b16 %v1886, %v1885
        %v1896 = vsel %vm681, %v1861, 0
        %v1899 = vsel %vm681, %v1870, 0
        %1901 = vmatprep.subr.bf16.mxu0 0
        %1902 = vmatpush1.bf16.msra.mxu0 %v1887
        %1903 = vmatprep.subr.bf16.mxu0 0
        %1904 = vmatpush1.bf16.msra.mxu0 %v1888
        %1905 = vmatprep.subr.bf16.mxu0 0
        %1906 = vmatpush1.bf16.msra.mxu0 %v1889
        %1907 = vmatprep.subr.bf16.mxu0 0
        %1908 = vmatpush1.bf16.msra.mxu0 %v1890
        %1909 = vmatprep.subr.bf16.mxu0 0
        %1910 = vmatpush1.bf16.msra.mxu0 0
        %1911 = vmatprep.subr.bf16.mxu0 0
        %1912 = vmatpush1.bf16.msra.mxu0 0
        %1913 = vmatprep.subr.bf16.mxu0 0
        %1914 = vmatpush1.bf16.msra.mxu0 0
        %1915 = vmatprep.subr.bf16.mxu0 0
        %1916 = vmatpush1.bf16.msra.mxu0 0
        %1917 = vmatprep.subr.bf16.mxu0 0
        %1918 = vmatpush1.bf16.msra.mxu0 0
        %1919 = vmatprep.subr.bf16.mxu0 0
        %1920 = vmatpush1.bf16.msra.mxu0 0
        %1921 = vmatprep.subr.bf16.mxu0 0
        %1922 = vmatpush1.bf16.msra.mxu0 0
        %1923 = vmatprep.subr.bf16.mxu0 0
        %1924 = vmatpush1.bf16.msra.mxu0 0
        %1925 = vmatprep.subr.bf16.mxu0 0
        %1926 = vmatpush1.bf16.msra.mxu0 0
        %1927 = vmatprep.subr.bf16.mxu0 0
        %1928 = vmatpush1.bf16.msra.mxu0 0
        %1929 = vmatprep.subr.bf16.mxu0 0
        %1930 = vmatpush1.bf16.msra.mxu0 0
        %1931 = vmatprep.subr.bf16.mxu0 0
        %1932 = vmatpush1.bf16.msra.mxu0 0
        %1933 = vmatprep.mubr.bf16.mxu0 0
        %1934 = vmatmul.mubr.bf16.gmra.mrb[0].mxu0 %v1896
        %v1935 = vpop.f32.mrb[0].mxu0
        %v1936 = vadd.f32 0.0, %v1935
        %v1937 = vpop.f32.mrb[0].mxu0
        %v1938 = vpop.f32.mrb[0].mxu0
        %v1939 = vadd.f32 0.0, %v1938
        %v1940 = vpop.f32.mrb[0].mxu0
        %1941 = vmatprep.mubr.bf16.mxu0 0
        %1942 = vmatmul.mubr.bf16.gmra.mrb[0].mxu0 %v1899
        %v1943 = vpop.f32.mrb[0].mxu0
        %v1944 = vadd.f32 0.0, %v1943
        %v1945 = vpop.f32.mrb[0].mxu0
        %v1946 = vpop.f32.mrb[0].mxu0
        %v1947 = vadd.f32 0.0, %v1946
        %v1948 = vpop.f32.mrb[0].mxu0
        %1949 = vdwg.mxu0
        %v1950 = vadd.f32 %v1768, %v1936
        %v1951 = vadd.f32 %v1769, %v1939
        %v1952 = vadd.f32 %v1770, %v1944
        %v1953 = vadd.f32 %v1771, %v1947
        %1954 = vst [vmem:[#allocation3] sm:$0xff] %v1950
        %1955 = vst [vmem:[#allocation3 + $0x8] sm:$0xff] %v1951
        %1956 = vst [vmem:[#allocation3 + $0x10] sm:$0xff] %v1952
        %1957 = vst [vmem:[#allocation3 + $0x18] sm:$0xff] %v1953
        %v1958 = vld [vmem:[#allocation3] sm:$0xff]
        %v1959 = vld [vmem:[#allocation3 + $0x8] sm:$0xff]
        %v1960 = vld [vmem:[#allocation3 + $0x10] sm:$0xff]
        %v1961 = vld [vmem:[#allocation3 + $0x18] sm:$0xff]
        %v1962 = vld [vmem:[#allocation2] sm:$0xc0]
        %v1963 = vld [vmem:[#allocation2 + $0x8] sm:$0xff]
        %v1964 = vld [vmem:[#allocation2 + $0x10] sm:$0x3f]
        %v1965 = vsel %vm741, 1, 0
        %v1966 = vsel %vm742, 1, 0
        %v1967 = vsel %vm743, 1, 0
        %v1968 = vsel %vm744, 1, 0
        %vm1969 = vcmp.eq.s32.totalorder %v1965, 1
        %vm1970 = vcmp.eq.s32.totalorder %v1966, 1
        %vm1971 = vcmp.eq.s32.totalorder %v1967, 1
        %vm1972 = vcmp.eq.s32.totalorder %v1968, 1
        %vm1973 = vmpackc.low %vm1969, %vm1969
        %vm1974 = vmpackc.low %vm1970, %vm1970
        %vm1975 = vmpackc.low %vm1971, %vm1971
        %vm1976 = vmpackc.low %vm1972, %vm1972
        %v1977 = vsel %vm1973, 65537, 0
        %v1978 = vsel %vm1974, 65537, 0
        %v1979 = vsel %vm1975, 65537, 0
        %v1980 = vsel %vm1976, 65537, 0
        %v1981 = vunpack.c.l.b16 %v1977
        %v1982 = vunpack.c.l.b16 %v1978
        %v1983 = vunpack.c.l.b16 %v1979
        %v1984 = vunpack.c.l.b16 %v1980
        %v1985 = vpack.c.b16 %v1982, %v1981
        %v1986 = vpack.c.b16 %v1984, %v1983
        %v1987 = vrot.slane %v1985, 2
        %v1988 = vrot.slane %v1986, 2
        %v1989 = vsel %vm998, %v1987, %v1988
        %vm1990 = vcmp.ne.s16.totalorder %v1987, 0
        %vm1991 = vcmp.ne.s16.totalorder %v1989, 0
        %vm1992 = vcmp.ne.s16.totalorder %v1988, 0
        %v1993 = vsel %vm1990, %v1962, 0
        %v1994 = vsel %vm1991, %v1963, 0
        %v1995 = vsel %vm1992, %v1964, 0
        %s1996 = scalar_lea.vmem [#allocation9], 224
        %v1997 = vld [vmem:[%s1996] sm:$0xf]
        %v1998 = vld [vmem:[%s1996 + $0x4] sm:$0xf]
        %v1999 = vld [vmem:[%s1996 + $0x8] sm:$0xf]
        %v2000 = vld [vmem:[%s1996 + $0xc] sm:$0xf]
        %v2001 = vld [vmem:[%s1996 + $0x10] sm:$0xf]
        %v2002 = vld [vmem:[%s1996 + $0x14] sm:$0xf]
        %v2003 = vld [vmem:[%s1996 + $0x18] sm:$0xf]
        %v2004 = vld [vmem:[%s1996 + $0x1c] sm:$0xf]
        %v2008 = vrot.slane %v1993, 6
        %v2009 = vrot.slane %v1994, 6
        %v2010 = vsel %vm976, %v2008, %v2009
        %v2011 = vrot.slane %v1995, 6
        %v2012 = vsel %vm976, %v2009, %v2011
        %v2021 = vunpack.c.l.b16 %v1997
        %v2022 = vunpack.c.l.b16 %v1998
        %v2023 = vunpack.c.l.b16 %v1999
        %v2024 = vunpack.c.l.b16 %v2000
        %v2025 = vunpack.c.l.b16 %v2001
        %v2026 = vunpack.c.l.b16 %v2002
        %v2027 = vunpack.c.l.b16 %v2003
        %v2028 = vunpack.c.l.b16 %v2004
        %v2029 = vpack.c.b16 %v2022, %v2021
        %v2030 = vpack.c.b16 %v2024, %v2023
        %v2031 = vpack.c.b16 %v2026, %v2025
        %v2032 = vpack.c.b16 %v2028, %v2027
        %v2038 = vsel %vm681, %v2010, 0
        %v2041 = vsel %vm681, %v2012, 0
        %2043 = vmatprep.subr.bf16.mxu0 0
        %2044 = vmatpush1.bf16.msra.mxu0 %v2029
        %2045 = vmatprep.subr.bf16.mxu0 0
        %2046 = vmatpush1.bf16.msra.mxu0 %v2030
        %2047 = vmatprep.subr.bf16.mxu0 0
        %2048 = vmatpush1.bf16.msra.mxu0 %v2031
        %2049 = vmatprep.subr.bf16.mxu0 0
        %2050 = vmatpush1.bf16.msra.mxu0 %v2032
        %2051 = vmatprep.subr.bf16.mxu0 0
        %2052 = vmatpush1.bf16.msra.mxu0 0
        %2053 = vmatprep.subr.bf16.mxu0 0
        %2054 = vmatpush1.bf16.msra.mxu0 0
        %2055 = vmatprep.subr.bf16.mxu0 0
        %2056 = vmatpush1.bf16.msra.mxu0 0
        %2057 = vmatprep.subr.bf16.mxu0 0
        %2058 = vmatpush1.bf16.msra.mxu0 0
        %2059 = vmatprep.subr.bf16.mxu0 0
        %2060 = vmatpush1.bf16.msra.mxu0 0
        %2061 = vmatprep.subr.bf16.mxu0 0
        %2062 = vmatpush1.bf16.msra.mxu0 0
        %2063 = vmatprep.subr.bf16.mxu0 0
        %2064 = vmatpush1.bf16.msra.mxu0 0
        %2065 = vmatprep.subr.bf16.mxu0 0
        %2066 = vmatpush1.bf16.msra.mxu0 0
        %2067 = vmatprep.subr.bf16.mxu0 0
        %2068 = vmatpush1.bf16.msra.mxu0 0
        %2069 = vmatprep.subr.bf16.mxu0 0
        %2070 = vmatpush1.bf16.msra.mxu0 0
        %2071 = vmatprep.subr.bf16.mxu0 0
        %2072 = vmatpush1.bf16.msra.mxu0 0
        %2073 = vmatprep.subr.bf16.mxu0 0
        %2074 = vmatpush1.bf16.msra.mxu0 0
        %2075 = vmatprep.mubr.bf16.mxu0 0
        %2076 = vmatmul.mubr.bf16.gmra.mrb[0].mxu0 %v2038
        %v2077 = vpop.f32.mrb[0].mxu0
        %v2078 = vadd.f32 0.0, %v2077
        %v2079 = vpop.f32.mrb[0].mxu0
        %v2080 = vpop.f32.mrb[0].mxu0
        %v2081 = vadd.f32 0.0, %v2080
        %v2082 = vpop.f32.mrb[0].mxu0
        %2083 = vmatprep.mubr.bf16.mxu0 0
        %2084 = vmatmul.mubr.bf16.gmra.mrb[0].mxu0 %v2041
        %v2085 = vpop.f32.mrb[0].mxu0
        %v2086 = vadd.f32 0.0, %v2085
        %v2087 = vpop.f32.mrb[0].mxu0
        %v2088 = vpop.f32.mrb[0].mxu0
        %v2089 = vadd.f32 0.0, %v2088
        %v2090 = vpop.f32.mrb[0].mxu0
        %2091 = vdwg.mxu0
        %v2092 = vadd.f32 %v1958, %v2078
        %v2093 = vadd.f32 %v1959, %v2081
        %v2094 = vadd.f32 %v1960, %v2086
        %v2095 = vadd.f32 %v1961, %v2089
        %2096 = vst [vmem:[#allocation3] sm:$0xff] %v2092
        %2097 = vst [vmem:[#allocation3 + $0x8] sm:$0xff] %v2093
        %2098 = vst [vmem:[#allocation3 + $0x10] sm:$0xff] %v2094
        %2099 = vst [vmem:[#allocation3 + $0x18] sm:$0xff] %v2095
        %v2100 = vld [vmem:[#allocation3] sm:$0xff]
        %v2101 = vld [vmem:[#allocation3 + $0x8] sm:$0xff]
        %v2102 = vld [vmem:[#allocation3 + $0x10] sm:$0xff]
        %v2103 = vld [vmem:[#allocation3 + $0x18] sm:$0xff]
        %v2104 = vld [vmem:[#allocation2] sm:$0xc0]
        %v2105 = vld [vmem:[#allocation2 + $0x8] sm:$0xff]
        %v2106 = vld [vmem:[#allocation2 + $0x10] sm:$0x7f]
        %vm2107 = vmand %vm741, %vm733
        %vm2108 = vmand %vm742, %vm734
        %vm2109 = vmand %vm743, %vm735
        %vm2110 = vmand %vm744, %vm736
        %v2111 = vsel %vm2107, 1, 0
        %v2112 = vsel %vm2108, 1, 0
        %v2113 = vsel %vm2109, 1, 0
        %v2114 = vsel %vm2110, 1, 0
        %2115 = vset.pattern.permute.xlu0 0
        %2116 = vperm.xlu0 %2115, %v2111
        %v2117 = vpop.permute.xlu0 %2116
        %2118 = vset.pattern.permute.xlu0 0
        %2119 = vperm.xlu0 %2118, %v2112
        %v2120 = vpop.permute.xlu0 %2119
        %2121 = vset.pattern.permute.xlu0 0
        %2122 = vperm.xlu0 %2121, %v2113
        %v2123 = vpop.permute.xlu0 %2122
        %2124 = vset.pattern.permute.xlu0 0
        %2125 = vperm.xlu0 %2124, %v2114
        %v2126 = vpop.permute.xlu0 %2125
        %vm2127 = vcmp.eq.s32.totalorder %v2117, 1
        %vm2128 = vcmp.eq.s32.totalorder %v2120, 1
        %vm2129 = vcmp.eq.s32.totalorder %v2123, 1
        %vm2130 = vcmp.eq.s32.totalorder %v2126, 1
        %vm2131 = vmpackc.low %vm2127, %vm2127
        %vm2132 = vmpackc.low %vm2128, %vm2128
        %vm2133 = vmpackc.low %vm2129, %vm2129
        %vm2134 = vmpackc.low %vm2130, %vm2130
        %v2135 = vsel %vm2131, 65537, 0
        %v2136 = vsel %vm2132, 65537, 0
        %v2137 = vsel %vm2133, 65537, 0
        %v2138 = vsel %vm2134, 65537, 0
        %v2139 = vunpack.c.l.b16 %v2135
        %v2140 = vunpack.c.l.b16 %v2136
        %v2141 = vunpack.c.l.b16 %v2137
        %v2142 = vunpack.c.l.b16 %v2138
        %v2143 = vpack.c.b16 %v2140, %v2139
        %v2144 = vpack.c.b16 %v2142, %v2141
        %v2146 = vshrl.u32 %v2143, 16
        %v2148 = vrot.slane %v2146, 1
        %v2149 = vshll.u32 %v2143, 16
        %v2151 = vrot.slane %v2149, 2
        %v2152 = vor.u32 %v2148, %v2151
        %v2154 = vshrl.u32 %v2144, 16
        %v2156 = vrot.slane %v2154, 1
        %v2157 = vshll.u32 %v2144, 16
        %v2159 = vrot.slane %v2157, 2
        %v2160 = vor.u32 %v2156, %v2159
        %v2161 = vsel %vm833, %v2152, %v2160
        %vm2162 = vcmp.ne.s16.totalorder %v2152, 0
        %vm2163 = vcmp.ne.s16.totalorder %v2161, 0
        %vm2164 = vcmp.ne.s16.totalorder %v2160, 0
        %v2165 = vsel %vm2162, %v2104, 0
        %v2166 = vsel %vm2163, %v2105, 0
        %v2167 = vsel %vm2164, %v2106, 0
        %s2168 = scalar_lea.vmem [#allocation9], 256
        %v2169 = vld [vmem:[%s2168] sm:$0xf]
        %v2170 = vld [vmem:[%s2168 + $0x4] sm:$0xf]
        %v2171 = vld [vmem:[%s2168 + $0x8] sm:$0xf]
        %v2172 = vld [vmem:[%s2168 + $0xc] sm:$0xf]
        %v2173 = vld [vmem:[%s2168 + $0x10] sm:$0xf]
        %v2174 = vld [vmem:[%s2168 + $0x14] sm:$0xf]
        %v2175 = vld [vmem:[%s2168 + $0x18] sm:$0xf]
        %v2176 = vld [vmem:[%s2168 + $0x1c] sm:$0xf]
        %v2178 = vshrl.u32 %v2165, 16
        %v2180 = vrot.slane %v2178, 6
        %v2181 = vshll.u32 %v2165, 16
        %v2183 = vrot.slane %v2181, 7
        %v2184 = vor.u32 %v2180, %v2183
        %v2186 = vshrl.u32 %v2166, 16
        %v2188 = vrot.slane %v2186, 6
        %v2189 = vshll.u32 %v2166, 16
        %v2191 = vrot.slane %v2189, 7
        %v2192 = vor.u32 %v2188, %v2191
        %v2193 = vsel %vm801, %v2184, %v2192
        %v2195 = vshrl.u32 %v2167, 16
        %v2197 = vrot.slane %v2195, 6
        %v2198 = vshll.u32 %v2167, 16
        %v2200 = vrot.slane %v2198, 7
        %v2201 = vor.u32 %v2197, %v2200
        %v2202 = vsel %vm801, %v2192, %v2201
        %v2211 = vunpack.c.l.b16 %v2169
        %v2212 = vunpack.c.l.b16 %v2170
        %v2213 = vunpack.c.l.b16 %v2171
        %v2214 = vunpack.c.l.b16 %v2172
        %v2215 = vunpack.c.l.b16 %v2173
        %v2216 = vunpack.c.l.b16 %v2174
        %v2217 = vunpack.c.l.b16 %v2175
        %v2218 = vunpack.c.l.b16 %v2176
        %v2219 = vpack.c.b16 %v2212, %v2211
        %v2220 = vpack.c.b16 %v2214, %v2213
        %v2221 = vpack.c.b16 %v2216, %v2215
        %v2222 = vpack.c.b16 %v2218, %v2217
        %v2228 = vsel %vm681, %v2193, 0
        %v2231 = vsel %vm681, %v2202, 0
        %2233 = vmatprep.subr.bf16.mxu0 0
        %2234 = vmatpush1.bf16.msra.mxu0 %v2219
        %2235 = vmatprep.subr.bf16.mxu0 0
        %2236 = vmatpush1.bf16.msra.mxu0 %v2220
        %2237 = vmatprep.subr.bf16.mxu0 0
        %2238 = vmatpush1.bf16.msra.mxu0 %v2221
        %2239 = vmatprep.subr.bf16.mxu0 0
        %2240 = vmatpush1.bf16.msra.mxu0 %v2222
        %2241 = vmatprep.subr.bf16.mxu0 0
        %2242 = vmatpush1.bf16.msra.mxu0 0
        %2243 = vmatprep.subr.bf16.mxu0 0
        %2244 = vmatpush1.bf16.msra.mxu0 0
        %2245 = vmatprep.subr.bf16.mxu0 0
        %2246 = vmatpush1.bf16.msra.mxu0 0
        %2247 = vmatprep.subr.bf16.mxu0 0
        %2248 = vmatpush1.bf16.msra.mxu0 0
        %2249 = vmatprep.subr.bf16.mxu0 0
        %2250 = vmatpush1.bf16.msra.mxu0 0
        %2251 = vmatprep.subr.bf16.mxu0 0
        %2252 = vmatpush1.bf16.msra.mxu0 0
        %2253 = vmatprep.subr.bf16.mxu0 0
        %2254 = vmatpush1.bf16.msra.mxu0 0
        %2255 = vmatprep.subr.bf16.mxu0 0
        %2256 = vmatpush1.bf16.msra.mxu0 0
        %2257 = vmatprep.subr.bf16.mxu0 0
        %2258 = vmatpush1.bf16.msra.mxu0 0
        %2259 = vmatprep.subr.bf16.mxu0 0
        %2260 = vmatpush1.bf16.msra.mxu0 0
        %2261 = vmatprep.subr.bf16.mxu0 0
        %2262 = vmatpush1.bf16.msra.mxu0 0
        %2263 = vmatprep.subr.bf16.mxu0 0
        %2264 = vmatpush1.bf16.msra.mxu0 0
        %2265 = vmatprep.mubr.bf16.mxu0 0
        %2266 = vmatmul.mubr.bf16.gmra.mrb[0].mxu0 %v2228
        %v2267 = vpop.f32.mrb[0].mxu0
        %v2268 = vadd.f32 0.0, %v2267
        %v2269 = vpop.f32.mrb[0].mxu0
        %v2270 = vpop.f32.mrb[0].mxu0
        %v2271 = vadd.f32 0.0, %v2270
        %v2272 = vpop.f32.mrb[0].mxu0
        %2273 = vmatprep.mubr.bf16.mxu0 0
        %2274 = vmatmul.mubr.bf16.gmra.mrb[0].mxu0 %v2231
        %v2275 = vpop.f32.mrb[0].mxu0
        %v2276 = vadd.f32 0.0, %v2275
        %v2277 = vpop.f32.mrb[0].mxu0
        %v2278 = vpop.f32.mrb[0].mxu0
        %v2279 = vadd.f32 0.0, %v2278
        %v2280 = vpop.f32.mrb[0].mxu0
        %2281 = vdwg.mxu0
        %v2282 = vadd.f32 %v2100, %v2268
        %v2283 = vadd.f32 %v2101, %v2271
        %v2284 = vadd.f32 %v2102, %v2276
        %v2285 = vadd.f32 %v2103, %v2279
        %2286 = vst [vmem:[#allocation3] sm:$0xff] %v2282
        %2287 = vst [vmem:[#allocation3 + $0x8] sm:$0xff] %v2283
        %2288 = vst [vmem:[#allocation3 + $0x10] sm:$0xff] %v2284
        %2289 = vst [vmem:[#allocation3 + $0x18] sm:$0xff] %v2285
        %v2290 = vld [vmem:[#allocation3] sm:$0xff]
        %v2291 = vld [vmem:[#allocation3 + $0x8] sm:$0xff]
        %v2292 = vld [vmem:[#allocation3 + $0x10] sm:$0xff]
        %v2293 = vld [vmem:[#allocation3 + $0x18] sm:$0xff]
        %v2294 = vld [vmem:[%s489] sm:$0xf]
        %v2295 = vld [vmem:[%s489 + $0x4] sm:$0xf]
        %v2296 = vld [vmem:[%s489 + $0x8] sm:$0xf]
        %v2297 = vld [vmem:[%s489 + $0xc] sm:$0xf]
        %v2298 = vunpack.c.l.bf16 %v2294
        %v2299 = vunpack.c.l.bf16 %v2295
        %v2300 = vunpack.c.l.bf16 %v2296
        %v2301 = vunpack.c.l.bf16 %v2297
        %v2302 = vadd.f32 %v2290, %v2298
        %v2303 = vadd.f32 %v2291, %v2299
        %v2304 = vadd.f32 %v2292, %v2300
        %v2305 = vadd.f32 %v2293, %v2301
        %v2306 = vpack.c.bf16 %v2303, %v2302
        %v2307 = vpack.c.bf16 %v2305, %v2304
        %v2310 = vunpack.c.l.b16 %v2306
        %v2311 = vunpack.c.h.b16 %v2306
        %v2312 = vunpack.c.l.b16 %v2307
        %v2313 = vunpack.c.h.b16 %v2307
        %v2314 = vpack.c.b16 %v2310, %v2310
        %v2315 = vpack.c.b16 %v2311, %v2311
        %v2316 = vpack.c.b16 %v2312, %v2312
        %v2317 = vpack.c.b16 %v2313, %v2313
        %2322 = vst [vmem:[%s548] sm:$0xf] %v2314
        %2323 = vst [vmem:[%s548 + $0x4] sm:$0xf] %v2315
        %2324 = vst [vmem:[%s548 + $0x8] sm:$0xf] %v2316
        %2325 = vst [vmem:[%s548 + $0xc] sm:$0xf] %v2317
        %s2326 = sand.u32 %s305, 1
        %s2327 = scalar_lea.sflag [#allocation6], %s2326
        %s2328 = sand.u32 %s305, 1
        %s2329 = smul.addr %s2328, 16
        %s2330 = scalar_lea.vmem [#allocation12], %s2329
        // Predicated region
        $region73: #{tpu_custom_call.1} parent=55 // pred_check
          %p2331 = pneg %p315
        $region74: #{tpu_custom_call.1} parent=55 // pred_check_branch
          %2333 = sbr.rel (%p2331) target = $region76
        $region75: #{tpu_custom_call.1} parent=55 // pred_region
          %s2334 = smul.u32 4, %s37
          %s2336 = ssub.s32 256, 256
          %2337 = vsyncadd %s2327, %s2336
          %s2338 = smul.addr %s36, 4
          %s2339 = sadd.s32 %s2334, %s2338
          %s2340 = smul.addr %s2339, 64
          %s2341 = scalar_lea.hbm %s9, %s2340
          %s2342 = sshll.u32 %s2330, 4
          %s2343 = int_to_ptr.vmem [resolvable:$true] %s2342
          %2348 = dma.vmem_to_hbm [thread:$0]  %s2343, 256, %s2341, %s2327, 64, 64, 4
        $region76: #{tpu_custom_call.1} parent=55 // pred_fallthru
          _
      $region56: #{tpu_custom_call.1} parent=5 // pred_fallthru
        _
      %p2349 = scmp.le.s32.totalorder 2, %s27
      // Predicated region
      $region77: #{tpu_custom_call.1} parent=5 // pred_check
        %p2350 = pneg %p2349
      $region78: #{tpu_custom_call.1} parent=5 // pred_check_branch
        %2352 = sbr.rel (%p2350) target = $region80
      $region79: #{tpu_custom_call.1} parent=5 // pred_region
        %s2353 = ssub.s32 %s27, 2
        // Predicated region
        $region81: #{tpu_custom_call.1} parent=79 // pred_check
          %p2354 = pneg %p321
        $region82: #{tpu_custom_call.1} parent=79 // pred_check_branch
          %2356 = sbr.rel (%p2354) target = $region84
        $region83: #{tpu_custom_call.1} parent=79 // pred_region
          %s2357 = sand.u32 %s306, 1
          %s2358 = scalar_lea.sflag [#allocation6], %s2357
          %s2359 = sand.u32 %s306, 1
          %s2360 = smul.addr %s2359, 16
          %s2361 = scalar_lea.vmem [#allocation12], %s2360
          %2362 = dma.done %s2358, 256
        $region84: #{tpu_custom_call.1} parent=79 // pred_fallthru
          _
      $region80: #{tpu_custom_call.1} parent=5 // pred_fallthru
        _
    $region6: #{tpu_custom_call.1} parent=1 // loop_footer
      %s31 = sadd.s32 1, %s27
    $region7: #{tpu_custom_call.1} parent=1 // loop_footer_branch
      %26 = sbr.rel target = $region3
    $region8: #{tpu_custom_call.1} parent=1 // loop_exit
      _
    %2363 = vsyncpa [#allocation5], 1
    %s2364 = scalar_lea.sflag [#allocation5], 1
    %2365 = vsyncpa %s2364, 1
    %2366 = vsyncpa [#allocation8], 1
    %s2367 = scalar_lea.sflag [#allocation8], 1
    %2368 = vsyncpa %s2367, 1
    %2369 = vsyncpa [#allocation11], 1
    %s2370 = scalar_lea.sflag [#allocation11], 1
    %2371 = vsyncpa %s2370, 1
    %2372 = vsyncpa [#allocation6], 1
    %s2373 = scalar_lea.sflag [#allocation6], 1
    %2374 = vsyncpa %s2373, 1

</llo_original>
